<compile_context>
chip_gen: v7x
topology: tpu7x:2x2x1
jax: 0.10.0
libtpu: 0.0.40
codegen_flags: <defaults>
</compile_context>

<pallas_src>
import functools

import jax
import jax.numpy as jnp
from jax import lax
from jax.experimental import pallas as pl
from jax.experimental.pallas import tpu as pltpu

EPS = 0.8  # BatchNorm2d(in_features, 0.8) positional arg is eps


def residual_block_kernel(x_ref, w1_ref, g1_ref, be1_ref, a_ref,
                          w2_ref, g2_ref, be2_ref, red_ref, o_ref, *, H, C):
    M, WC = x_ref.shape            # M = N*H rows, WC = W*C lanes (= 128)
    W = WC // C
    inv_count = 1.0 / (M * W)      # 1 / (N*H*W): BN sample count per channel

    x = x_ref[...]

    # Image-boundary masks for the +/-1 row (ky) shifts, shared by both convs.
    row = lax.broadcasted_iota(jnp.int32, (M, WC), 0)
    not_top = (row % H) != 0            # row h-1 exists within the same image
    not_bot = (row % H) != (H - 1)      # row h+1 exists within the same image
    zero_row = jnp.zeros((1, WC), jnp.float32)

    def conv3x3(src, w_ref_):
        # ky row shifts: static sublane shift (slice + concat) + boundary mask
        # (VPU/XLU work, overlaps with the MXU).  kx shifts + Cin->Cout mixing
        # are folded into a single banded-Toeplitz weight, so the whole conv
        # is ONE lane-dense (M, 384) @ (384, 128) bf16 MXU matmul.  Conv bias
        # omitted: it is exactly cancelled by training-mode BN mean removal.
        up = jnp.where(not_top,
                       jnp.concatenate([zero_row, src[:M - 1, :]], axis=0), 0.0)
        dn = jnp.where(not_bot,
                       jnp.concatenate([src[1:, :], zero_row], axis=0), 0.0)
        cat = jnp.concatenate([up, src, dn], axis=1).astype(jnp.bfloat16)
        return jnp.dot(cat, w_ref_[...], preferred_element_type=jnp.float32)

    def bn_affine(h, g, be):
        # One-pass training-mode BN (biased variance) folded into per-lane
        # scale/shift.  (h @ R) with R = kron(ones(W,W), eye(C)) sums over the
        # W lane-groups per channel and broadcasts the result back to every
        # (w, c) lane; the sublane sum then covers all N*H*W samples.
        red = red_ref[...]
        tot = jnp.sum(jnp.dot(h, red, preferred_element_type=jnp.float32),
                      axis=0, keepdims=True)                      # (1, WC)
        tot2 = jnp.sum(jnp.dot(h * h, red, preferred_element_type=jnp.float32),
                       axis=0, keepdims=True)                     # (1, WC)
        mean = tot * inv_count
        var = tot2 * inv_count - mean * mean
        scale = g * lax.rsqrt(var + EPS)                          # EUP rsqrt
        shift = be - mean * scale
        return scale, shift

    # ---- conv1 -> BN1 -> PReLU (fused epilogue, all f32 on the VPU) ----
    h = conv3x3(x, w1_ref)
    s1, t1 = bn_affine(h, g1_ref[...], be1_ref[...])
    h = h * s1 + t1
    alpha = a_ref[0, 0]                                           # SMEM scalar
    h = jnp.where(h > 0, h, alpha * h)

    # ---- conv2 -> BN2, residual add fused into the epilogue ----
    h2 = conv3x3(h, w2_ref)
    s2, t2 = bn_affine(h2, g2_ref[...], be2_ref[...])
    # Re-read x from VMEM (cheap vld; frees live registers at larger tiles).
    o_ref[...] = x_ref[...] + h2 * s2 + t2


def _build_band_weights(w_hwio, W, C):
    # (3, 3, Cin, Cout) -> one (3*W*C, W*C) bf16 weight: for each ky, a banded
    # Toeplitz block  B[ky][(w+kx-1)*C + ci, w*C + co] = w_hwio[ky, kx, ci, co]
    # (SAME padding along W handled by the band structure), stacked ky-major so
    # that [up | src | dn] @ W_stacked == up@B0 + src@B1 + dn@B2.
    blocks = []
    for ky in range(3):
        b = jnp.zeros((W * C, W * C), jnp.float32)
        for kx in range(3):
            b = b + jnp.kron(jnp.eye(W, k=1 - kx, dtype=jnp.float32),
                             w_hwio[ky, kx])
        blocks.append(b)
    return jnp.concatenate(blocks, axis=0).astype(jnp.bfloat16)


def residual_block_pallas(x_nhwc, p):
    N, H, W, C = x_nhwc.shape
    assert W * C == 128, "demo kernel assumes lane-dense W*C == 128"
    M, WC = N * H, W * C

    x2d = x_nhwc.reshape(M, WC)                     # free reshape, lane-dense
    w1 = _build_band_weights(p["w1"], W, C)         # (384, 128) bf16
    w2 = _build_band_weights(p["w2"], W, C)
    # Per-channel reduce/broadcast matrix for BN stats: kron(ones(W,W), eye(C)).
    red = jnp.kron(jnp.ones((W, W), jnp.float32), jnp.eye(C, dtype=jnp.float32))
    tile = lambda v: jnp.tile(v.reshape(1, C), (1, W))   # per-channel -> lane-dense
    g1, be1 = tile(p["g1"]), tile(p["be1"])
    g2, be2 = tile(p["g2"]), tile(p["be2"])
    a = p["a"].reshape(1, 1)

    vmem = pl.BlockSpec(memory_space=pltpu.MemorySpace.VMEM)
    smem = pl.BlockSpec(memory_space=pltpu.MemorySpace.SMEM)

    out2d = pl.pallas_call(
        functools.partial(residual_block_kernel, H=H, C=C),
        out_shape=jax.ShapeDtypeStruct((M, WC), jnp.float32),
        in_specs=[vmem, vmem, vmem, vmem, smem, vmem, vmem, vmem, vmem],
        out_specs=vmem,
    )(x2d, w1, g1, be1, a, w2, g2, be2, red)
    return out2d.reshape(N, H, W, C)


def residual_block_ref(x_nhwc, p):
    # Pure-JAX reference.  It *includes* the conv biases (the kernel omits
    # them) to verify that training-mode BN cancels them exactly.
    def conv(h, w, b):
        y = lax.conv_general_dilated(
            h, w, window_strides=(1, 1), padding="SAME",
            dimension_numbers=("NHWC", "HWIO", "NHWC"))
        return y + b.reshape(1, 1, 1, -1)

    def bn(h, g, be):
        mean = jnp.mean(h, axis=(0, 1, 2), keepdims=True)
        var = jnp.mean((h - mean) ** 2, axis=(0, 1, 2), keepdims=True)
        return (h - mean) / jnp.sqrt(var + EPS) * g.reshape(1, 1, 1, -1) \
            + be.reshape(1, 1, 1, -1)

    h = conv(x_nhwc, p["w1"], p["b1"])
    h = bn(h, p["g1"], p["be1"])
    h = jnp.where(h > 0, h, p["a"][0, 0] * h)
    h = conv(h, p["w2"], p["b2"])
    h = bn(h, p["g2"], p["be2"])
    return x_nhwc + h


if __name__ == "__main__":
    # ResidualBlock(in_features=8) on NCHW input (2, 8, 16, 16):
    # C=8, W=16  ->  W*C = 128 lane-dense rows.
    N, C, H, W = 2, 8, 16, 16

    key = jax.random.PRNGKey(0)
    ks = jax.random.split(key, 9)

    # Conv weights stored HWIO (3, 3, C_in, C_out) (== PyTorch (C_out,C_in,3,3)
    # transposed).  Biases exist only in the reference: the kernel drops them
    # since training-mode BN cancels them exactly.
    params = {
        "w1": 0.1 * jax.random.normal(ks[0], (3, 3, C, C), jnp.float32),
        "b1": 0.1 * jax.random.normal(ks[1], (1, C), jnp.float32),
        "g1": 1.0 + 0.1 * jax.random.normal(ks[2], (1, C), jnp.float32),
        "be1": 0.1 * jax.random.normal(ks[3], (1, C), jnp.float32),
        "a": jnp.full((1, 1), 0.25, jnp.float32),   # PReLU default init
        "w2": 0.1 * jax.random.normal(ks[4], (3, 3, C, C), jnp.float32),
        "b2": 0.1 * jax.random.normal(ks[5], (1, C), jnp.float32),
        "g2": 1.0 + 0.1 * jax.random.normal(ks[6], (1, C), jnp.float32),
        "be2": 0.1 * jax.random.normal(ks[7], (1, C), jnp.float32),
    }

    x_nchw = jax.random.normal(ks[8], (N, C, H, W), jnp.float32)
    x_nhwc = jnp.transpose(x_nchw, (0, 2, 3, 1))      # NCHW -> NHWC (channels last)

    out_nhwc = jax.block_until_ready(residual_block_pallas(x_nhwc, params))
    out_nchw = jnp.transpose(out_nhwc, (0, 3, 1, 2))  # back to NCHW

    ref_nhwc = residual_block_ref(x_nhwc, params)
    assert out_nchw.shape == (N, C, H, W)
    # Tolerance reflects bf16 operand truncation at the MXU (same numerics as
    # DEFAULT f32 matmul precision on TPU); all other math is f32.
    assert jnp.allclose(out_nhwc, ref_nhwc, rtol=2e-2, atol=2e-2), \
        "Pallas output does not match JAX reference"

    print("KERNEL_OK")
</pallas_src>

<mosaic_0001>
module attributes {stable_mosaic.version = 11 : i64} {
  func.func @residual_block_kernel(%arg0: memref<32x128xf32, #tpu.memory_space<vmem>>, %arg1: memref<384x128xbf16, #tpu.memory_space<vmem>>, %arg2: memref<1x128xf32, #tpu.memory_space<vmem>>, %arg3: memref<1x128xf32, #tpu.memory_space<vmem>>, %arg4: memref<1x1xf32, #tpu.memory_space<smem>>, %arg5: memref<384x128xbf16, #tpu.memory_space<vmem>>, %arg6: memref<1x128xf32, #tpu.memory_space<vmem>>, %arg7: memref<1x128xf32, #tpu.memory_space<vmem>>, %arg8: memref<128x128xf32, #tpu.memory_space<vmem>>, %arg9: memref<32x128xf32, #tpu.memory_space<vmem>>) attributes {dimension_semantics = [], scalar_prefetch = 0 : i64, scratch_operands = 0 : i64, tpu.core_type = #tpu.core_type<tc>} {
    %c0 = arith.constant 0 : index
    %c0_0 = arith.constant 0 : index
    %0 = vector.load %arg0[%c0, %c0_0] : memref<32x128xf32, #tpu.memory_space<vmem>>, vector<32x128xf32>
    %1 = tpu.iota {dimensions = array<i32: 0>} : vector<32x128xi32>
    %c16_i32 = arith.constant 16 : i32
    %c0_i32 = arith.constant 0 : i32
    %2 = arith.cmpi eq, %c16_i32, %c0_i32 : i32
    %c1_i32 = arith.constant 1 : i32
    %3 = arith.select %2, %c1_i32, %c16_i32 : i32
    %4 = vector.broadcast %3 : i32 to vector<32x128xi32>
    %5 = arith.remsi %1, %4 : vector<32x128xi32>
    %c0_i32_1 = arith.constant 0 : i32
    %6 = vector.broadcast %c0_i32_1 : i32 to vector<32x128xi32>
    %7 = arith.cmpi ne, %5, %6 : vector<32x128xi32>
    %c0_i32_2 = arith.constant 0 : i32
    %8 = vector.broadcast %c0_i32_2 : i32 to vector<32x128xi32>
    %9 = arith.cmpi slt, %5, %8 : vector<32x128xi32>
    %c0_i32_3 = arith.constant 0 : i32
    %10 = arith.cmpi slt, %3, %c0_i32_3 : i32
    %11 = vector.broadcast %10 : i1 to vector<32x128xi1>
    %12 = vector.broadcast %11 : vector<32x128xi1> to vector<32x128xi1>
    %13 = arith.xori %9, %12 : vector<32x128xi1>
    %14 = arith.andi %13, %7 : vector<32x128xi1>
    %15 = vector.broadcast %3 : i32 to vector<32x128xi32>
    %16 = arith.addi %5, %15 : vector<32x128xi32>
    %17 = arith.select %14, %16, %5 : vector<32x128xi1>, vector<32x128xi32>
    %c0_i32_4 = arith.constant 0 : i32
    %18 = vector.broadcast %c0_i32_4 : i32 to vector<32x128xi32>
    %19 = arith.cmpi ne, %17, %18 : vector<32x128xi32>
    %c16_i32_5 = arith.constant 16 : i32
    %c0_i32_6 = arith.constant 0 : i32
    %20 = arith.cmpi eq, %c16_i32_5, %c0_i32_6 : i32
    %c1_i32_7 = arith.constant 1 : i32
    %21 = arith.select %20, %c1_i32_7, %c16_i32_5 : i32
    %22 = vector.broadcast %21 : i32 to vector<32x128xi32>
    %23 = arith.remsi %1, %22 : vector<32x128xi32>
    %c0_i32_8 = arith.constant 0 : i32
    %24 = vector.broadcast %c0_i32_8 : i32 to vector<32x128xi32>
    %25 = arith.cmpi ne, %23, %24 : vector<32x128xi32>
    %c0_i32_9 = arith.constant 0 : i32
    %26 = vector.broadcast %c0_i32_9 : i32 to vector<32x128xi32>
    %27 = arith.cmpi slt, %23, %26 : vector<32x128xi32>
    %c0_i32_10 = arith.constant 0 : i32
    %28 = arith.cmpi slt, %21, %c0_i32_10 : i32
    %29 = vector.broadcast %28 : i1 to vector<32x128xi1>
    %30 = vector.broadcast %29 : vector<32x128xi1> to vector<32x128xi1>
    %31 = arith.xori %27, %30 : vector<32x128xi1>
    %32 = arith.andi %31, %25 : vector<32x128xi1>
    %33 = vector.broadcast %21 : i32 to vector<32x128xi32>
    %34 = arith.addi %23, %33 : vector<32x128xi32>
    %35 = arith.select %32, %34, %23 : vector<32x128xi1>, vector<32x128xi32>
    %c15_i32 = arith.constant 15 : i32
    %36 = vector.broadcast %c15_i32 : i32 to vector<32x128xi32>
    %37 = arith.cmpi ne, %35, %36 : vector<32x128xi32>
    %cst = arith.constant 0.000000e+00 : f32
    %38 = vector.broadcast %cst : f32 to vector<1x128xf32>
    %39 = vector.extract_strided_slice %0 {offsets = [0, 0], sizes = [31, 128], strides = [1, 1]} : vector<32x128xf32> to vector<31x128xf32>
    %40 = tpu.concatenate %38, %39 in 0 : vector<1x128xf32>, vector<31x128xf32> -> vector<32x128xf32>
    %cst_11 = arith.constant 0.000000e+00 : f32
    %41 = vector.broadcast %cst_11 : f32 to vector<32x128xf32>
    %42 = arith.select %19, %40, %41 : vector<32x128xi1>, vector<32x128xf32>
    %43 = vector.extract_strided_slice %0 {offsets = [1, 0], sizes = [31, 128], strides = [1, 1]} : vector<32x128xf32> to vector<31x128xf32>
    %44 = tpu.concatenate %43, %38 in 0 : vector<31x128xf32>, vector<1x128xf32> -> vector<32x128xf32>
    %cst_12 = arith.constant 0.000000e+00 : f32
    %45 = vector.broadcast %cst_12 : f32 to vector<32x128xf32>
    %46 = arith.select %37, %44, %45 : vector<32x128xi1>, vector<32x128xf32>
    %47 = tpu.concatenate %42, %0, %46 in 1 : vector<32x128xf32>, vector<32x128xf32>, vector<32x128xf32> -> vector<32x384xf32>
    %48 = arith.truncf %47 : vector<32x384xf32> to vector<32x384xbf16>
    %c0_13 = arith.constant 0 : index
    %c0_14 = arith.constant 0 : index
    %49 = vector.load %arg1[%c0_13, %c0_14] : memref<384x128xbf16, #tpu.memory_space<vmem>>, vector<384x128xbf16>
    %cst_15 = arith.constant dense<0.000000e+00> : vector<32x128xf32>
    %50 = tpu.matmul %48, %49, %cst_15 {dimension_numbers = #tpu.dot_dimension_numbers<[1], [0], [0], [1], [0, 0, 1, 1], [], []>} : vector<32x384xbf16>, vector<384x128xbf16>, vector<32x128xf32> -> vector<32x128xf32>
    %c0_16 = arith.constant 0 : index
    %c0_17 = arith.constant 0 : index
    %51 = vector.load %arg2[%c0_16, %c0_17] : memref<1x128xf32, #tpu.memory_space<vmem>>, vector<1x128xf32>
    %c0_18 = arith.constant 0 : index
    %c0_19 = arith.constant 0 : index
    %52 = vector.load %arg3[%c0_18, %c0_19] : memref<1x128xf32, #tpu.memory_space<vmem>>, vector<1x128xf32>
    %c0_20 = arith.constant 0 : index
    %c0_21 = arith.constant 0 : index
    %53 = vector.load %arg8[%c0_20, %c0_21] : memref<128x128xf32, #tpu.memory_space<vmem>>, vector<128x128xf32>
    %cst_22 = arith.constant dense<0.000000e+00> : vector<32x128xf32>
    %54 = tpu.matmul %50, %53, %cst_22 {dimension_numbers = #tpu.dot_dimension_numbers<[1], [0], [0], [1], [0, 0, 1, 1], [], []>} : vector<32x128xf32>, vector<128x128xf32>, vector<32x128xf32> -> vector<32x128xf32>
    %cst_23 = arith.constant dense<0.000000e+00> : vector<128xf32>
    %55 = vector.multi_reduction <add>, %54, %cst_23 [0] : vector<32x128xf32> to vector<128xf32>
    %56 = vector.shape_cast %55 : vector<128xf32> to vector<1x128xf32>
    %57 = arith.mulf %50, %50 : vector<32x128xf32>
    %cst_24 = arith.constant dense<0.000000e+00> : vector<32x128xf32>
    %58 = tpu.matmul %57, %53, %cst_24 {dimension_numbers = #tpu.dot_dimension_numbers<[1], [0], [0], [1], [0, 0, 1, 1], [], []>} : vector<32x128xf32>, vector<128x128xf32>, vector<32x128xf32> -> vector<32x128xf32>
    %cst_25 = arith.constant dense<0.000000e+00> : vector<128xf32>
    %59 = vector.multi_reduction <add>, %58, %cst_25 [0] : vector<32x128xf32> to vector<128xf32>
    %60 = vector.shape_cast %59 : vector<128xf32> to vector<1x128xf32>
    %cst_26 = arith.constant 0.001953125 : f32
    %61 = vector.broadcast %cst_26 : f32 to vector<1x128xf32>
    %62 = arith.mulf %56, %61 : vector<1x128xf32>
    %cst_27 = arith.constant 0.001953125 : f32
    %63 = vector.broadcast %cst_27 : f32 to vector<1x128xf32>
    %64 = arith.mulf %60, %63 : vector<1x128xf32>
    %65 = arith.mulf %62, %62 : vector<1x128xf32>
    %66 = arith.subf %64, %65 : vector<1x128xf32>
    %cst_28 = arith.constant 8.000000e-01 : f32
    %67 = vector.broadcast %cst_28 : f32 to vector<1x128xf32>
    %68 = arith.addf %66, %67 : vector<1x128xf32>
    %69 = math.rsqrt %68 : vector<1x128xf32>
    %70 = arith.mulf %51, %69 : vector<1x128xf32>
    %71 = arith.mulf %62, %70 : vector<1x128xf32>
    %72 = arith.subf %52, %71 : vector<1x128xf32>
    %73 = vector.broadcast %70 : vector<1x128xf32> to vector<32x128xf32>
    %74 = arith.mulf %50, %73 : vector<32x128xf32>
    %75 = vector.broadcast %72 : vector<1x128xf32> to vector<32x128xf32>
    %76 = arith.addf %74, %75 : vector<32x128xf32>
    %c0_29 = arith.constant 0 : index
    %c0_30 = arith.constant 0 : index
    %77 = memref.load %arg4[%c0_29, %c0_30] : memref<1x1xf32, #tpu.memory_space<smem>>
    %cst_31 = arith.constant 0.000000e+00 : f32
    %78 = vector.broadcast %cst_31 : f32 to vector<32x128xf32>
    %79 = arith.cmpf ogt, %76, %78 : vector<32x128xf32>
    %80 = vector.broadcast %77 : f32 to vector<32x128xf32>
    %81 = arith.mulf %80, %76 : vector<32x128xf32>
    %82 = arith.select %79, %76, %81 : vector<32x128xi1>, vector<32x128xf32>
    %83 = vector.extract_strided_slice %82 {offsets = [0, 0], sizes = [31, 128], strides = [1, 1]} : vector<32x128xf32> to vector<31x128xf32>
    %84 = tpu.concatenate %38, %83 in 0 : vector<1x128xf32>, vector<31x128xf32> -> vector<32x128xf32>
    %cst_32 = arith.constant 0.000000e+00 : f32
    %85 = vector.broadcast %cst_32 : f32 to vector<32x128xf32>
    %86 = arith.select %19, %84, %85 : vector<32x128xi1>, vector<32x128xf32>
    %87 = vector.extract_strided_slice %82 {offsets = [1, 0], sizes = [31, 128], strides = [1, 1]} : vector<32x128xf32> to vector<31x128xf32>
    %88 = tpu.concatenate %87, %38 in 0 : vector<31x128xf32>, vector<1x128xf32> -> vector<32x128xf32>
    %cst_33 = arith.constant 0.000000e+00 : f32
    %89 = vector.broadcast %cst_33 : f32 to vector<32x128xf32>
    %90 = arith.select %37, %88, %89 : vector<32x128xi1>, vector<32x128xf32>
    %91 = tpu.concatenate %86, %82, %90 in 1 : vector<32x128xf32>, vector<32x128xf32>, vector<32x128xf32> -> vector<32x384xf32>
    %92 = arith.truncf %91 : vector<32x384xf32> to vector<32x384xbf16>
    %c0_34 = arith.constant 0 : index
    %c0_35 = arith.constant 0 : index
    %93 = vector.load %arg5[%c0_34, %c0_35] : memref<384x128xbf16, #tpu.memory_space<vmem>>, vector<384x128xbf16>
    %cst_36 = arith.constant dense<0.000000e+00> : vector<32x128xf32>
    %94 = tpu.matmul %92, %93, %cst_36 {dimension_numbers = #tpu.dot_dimension_numbers<[1], [0], [0], [1], [0, 0, 1, 1], [], []>} : vector<32x384xbf16>, vector<384x128xbf16>, vector<32x128xf32> -> vector<32x128xf32>
    %c0_37 = arith.constant 0 : index
    %c0_38 = arith.constant 0 : index
    %95 = vector.load %arg6[%c0_37, %c0_38] : memref<1x128xf32, #tpu.memory_space<vmem>>, vector<1x128xf32>
    %c0_39 = arith.constant 0 : index
    %c0_40 = arith.constant 0 : index
    %96 = vector.load %arg7[%c0_39, %c0_40] : memref<1x128xf32, #tpu.memory_space<vmem>>, vector<1x128xf32>
    %c0_41 = arith.constant 0 : index
    %c0_42 = arith.constant 0 : index
    %97 = vector.load %arg8[%c0_41, %c0_42] : memref<128x128xf32, #tpu.memory_space<vmem>>, vector<128x128xf32>
    %cst_43 = arith.constant dense<0.000000e+00> : vector<32x128xf32>
    %98 = tpu.matmul %94, %97, %cst_43 {dimension_numbers = #tpu.dot_dimension_numbers<[1], [0], [0], [1], [0, 0, 1, 1], [], []>} : vector<32x128xf32>, vector<128x128xf32>, vector<32x128xf32> -> vector<32x128xf32>
    %cst_44 = arith.constant dense<0.000000e+00> : vector<128xf32>
    %99 = vector.multi_reduction <add>, %98, %cst_44 [0] : vector<32x128xf32> to vector<128xf32>
    %100 = vector.shape_cast %99 : vector<128xf32> to vector<1x128xf32>
    %101 = arith.mulf %94, %94 : vector<32x128xf32>
    %cst_45 = arith.constant dense<0.000000e+00> : vector<32x128xf32>
    %102 = tpu.matmul %101, %97, %cst_45 {dimension_numbers = #tpu.dot_dimension_numbers<[1], [0], [0], [1], [0, 0, 1, 1], [], []>} : vector<32x128xf32>, vector<128x128xf32>, vector<32x128xf32> -> vector<32x128xf32>
    %cst_46 = arith.constant dense<0.000000e+00> : vector<128xf32>
    %103 = vector.multi_reduction <add>, %102, %cst_46 [0] : vector<32x128xf32> to vector<128xf32>
    %104 = vector.shape_cast %103 : vector<128xf32> to vector<1x128xf32>
    %cst_47 = arith.constant 0.001953125 : f32
    %105 = vector.broadcast %cst_47 : f32 to vector<1x128xf32>
    %106 = arith.mulf %100, %105 : vector<1x128xf32>
    %cst_48 = arith.constant 0.001953125 : f32
    %107 = vector.broadcast %cst_48 : f32 to vector<1x128xf32>
    %108 = arith.mulf %104, %107 : vector<1x128xf32>
    %109 = arith.mulf %106, %106 : vector<1x128xf32>
    %110 = arith.subf %108, %109 : vector<1x128xf32>
    %cst_49 = arith.constant 8.000000e-01 : f32
    %111 = vector.broadcast %cst_49 : f32 to vector<1x128xf32>
    %112 = arith.addf %110, %111 : vector<1x128xf32>
    %113 = math.rsqrt %112 : vector<1x128xf32>
    %114 = arith.mulf %95, %113 : vector<1x128xf32>
    %115 = arith.mulf %106, %114 : vector<1x128xf32>
    %116 = arith.subf %96, %115 : vector<1x128xf32>
    %c0_50 = arith.constant 0 : index
    %c0_51 = arith.constant 0 : index
    %117 = vector.load %arg0[%c0_50, %c0_51] : memref<32x128xf32, #tpu.memory_space<vmem>>, vector<32x128xf32>
    %118 = vector.broadcast %114 : vector<1x128xf32> to vector<32x128xf32>
    %119 = arith.mulf %94, %118 : vector<32x128xf32>
    %120 = arith.addf %117, %119 : vector<32x128xf32>
    %121 = vector.broadcast %116 : vector<1x128xf32> to vector<32x128xf32>
    %122 = arith.addf %120, %121 : vector<32x128xf32>
    %c0_52 = arith.constant 0 : index
    %c0_53 = arith.constant 0 : index
    %123 = vector.load %arg9[%c0_52, %c0_53] : memref<32x128xf32, #tpu.memory_space<vmem>>, vector<32x128xf32>
    tpu.vector_store %arg9[%c0_52, %c0_53], %122 {strides = array<i32>} : memref<32x128xf32, #tpu.memory_space<vmem>>, vector<32x128xf32>,
    return
  }
}

</mosaic_0001>

<llo_original>
// kernel: tpu_custom_call.1
$region0: #{tpu_custom_call.1}
  #allocation0 [shape = 'u32[]', space=smem, size = 0x4, offset = 0x4, fixed_abs, tag = 'smem constant byte address 0x4 - core index']
  #allocation1 [shape = 'u32[144,128]{1,0:T(1,128)}', space=vmem, size = 0x12000, scoped, tag = 'internal scratch']
  #allocation2 [shape = 'f32[1,1]{1,0:T(1,128)S(6)}', space=smem, size = 0x200, scoped, tag = 'scoped memory for tpu_custom_call.1']
  %s0 = inlined_call_operand.hbm [shape: f32[32,128], index: 0, kind: input, shape index: {}]
  %s1 = inlined_call_operand.hbm [shape: bf16[384,128], index: 1, kind: input, shape index: {}]
  %s2 = inlined_call_operand.vmem [shape: f32[1,128], index: 2, kind: input, shape index: {}]
  %s3 = inlined_call_operand.vmem [shape: f32[1,128], index: 3, kind: input, shape index: {}]
  %s4 = inlined_call_operand.<no memory space> [shape: f32[1,1], index: 4, kind: input, shape index: {}]
  %s5 = inlined_call_operand.hbm [shape: bf16[384,128], index: 5, kind: input, shape index: {}]
  %s6 = inlined_call_operand.vmem [shape: f32[1,128], index: 6, kind: input, shape index: {}]
  %s7 = inlined_call_operand.vmem [shape: f32[1,128], index: 7, kind: input, shape index: {}]
  %s8 = inlined_call_operand.hbm [shape: f32[128,128], index: 8, kind: input, shape index: {}]
  %s9 = inlined_call_operand.hbm [shape: f32[32,128], index: 9, kind: output, shape index: {}]
  %s10 = sld [smem:[#allocation0]]
  $region62: #{tpu_custom_call.1} parent=0
    _
  %s12 = ssub.s32 1, %s10
  %s13 = scalar_select 0, %s12, %s10
  %14 = sst [smem:[#allocation2]] %s4
  $region1: #{tpu_custom_call.1} parent=0
    #allocation3 [shape = 'u8[16384]{0}', space=vmem, size = 0x4000, scoped, tag = 'input window, operand 0, single buffered']
    #allocation4 [shape = 's32[1]{0}', space=sflag, size = 0x4, scoped, tag = 'scoped memory for tpu_custom_call.1']
    #allocation5 [shape = 's32[1]{0}', space=sflag, size = 0x4, scoped, tag = 'scoped memory for tpu_custom_call.1']
    #allocation6 [shape = 'u8[98304]{0}', space=vmem, size = 0x18000, scoped, tag = 'input window, operand 1, single buffered']
    #allocation7 [shape = 's32[1]{0}', space=sflag, size = 0x4, scoped, tag = 'scoped memory for tpu_custom_call.1']
    #allocation8 [shape = 'u8[98304]{0}', space=vmem, size = 0x18000, scoped, tag = 'input window, operand 5, single buffered']
    #allocation9 [shape = 'u8[65536]{0}', space=vmem, size = 0x10000, scoped, tag = 'input window, operand 8, single buffered']
    #allocation10 [shape = 's32[1]{0}', space=sflag, size = 0x4, scoped, tag = 'scoped memory for tpu_custom_call.1']
    #allocation11 [shape = 'u8[16384]{0}', space=vmem, size = 0x4000, scoped, tag = 'output window, operand 0, single buffered']
    %15 = vsyncpa [#allocation4], 0
    %16 = vsyncpa [#allocation7], 0
    %17 = vsyncpa [#allocation10], 0
    %18 = vsyncpa [#allocation5], 0
    // Predicated region
    $region2: #{tpu_custom_call.1} parent=1 // pred_check
      _
    $region3: #{tpu_custom_call.1} parent=1 // pred_check_branch
      %20 = sbr.rel (0) target = $region5
    $region4: #{tpu_custom_call.1} parent=1 // pred_region
      %s22 = ssub.s32 512, 512
      %23 = vsyncadd [#allocation4], %s22
      %s24 = sshll.u32 [#allocation3], 4
      %s25 = int_to_ptr.vmem [resolvable:$true] %s24
      %30 = dma.hbm_to_vmem [thread:$0]  %s0, 512, %s25, [#allocation4], 128, 128, 8
    $region5: #{tpu_custom_call.1} parent=1 // pred_fallthru
      _
    // Predicated region
    $region6: #{tpu_custom_call.1} parent=1 // pred_check
      _
    $region7: #{tpu_custom_call.1} parent=1 // pred_check_branch
      %32 = sbr.rel (0) target = $region9
    $region8: #{tpu_custom_call.1} parent=1 // pred_region
      %s34 = ssub.s32 3072, 3072
      %35 = vsyncadd [#allocation7], %s34
      %s36 = sshll.u32 [#allocation6], 4
      %s37 = int_to_ptr.vmem [resolvable:$true] %s36
      %42 = dma.hbm_to_vmem [thread:$0]  %s1, 3072, %s37, [#allocation7], 64, 64, 4
    $region9: #{tpu_custom_call.1} parent=1 // pred_fallthru
      _
    // Predicated region
    $region10: #{tpu_custom_call.1} parent=1 // pred_check
      _
    $region11: #{tpu_custom_call.1} parent=1 // pred_check_branch
      %44 = sbr.rel (0) target = $region13
    $region12: #{tpu_custom_call.1} parent=1 // pred_region
      _
    $region13: #{tpu_custom_call.1} parent=1 // pred_fallthru
      _
    // Predicated region
    $region14: #{tpu_custom_call.1} parent=1 // pred_check
      _
    $region15: #{tpu_custom_call.1} parent=1 // pred_check_branch
      %46 = sbr.rel (0) target = $region17
    $region16: #{tpu_custom_call.1} parent=1 // pred_region
      _
    $region17: #{tpu_custom_call.1} parent=1 // pred_fallthru
      _
    // Predicated region
    $region18: #{tpu_custom_call.1} parent=1 // pred_check
      _
    $region19: #{tpu_custom_call.1} parent=1 // pred_check_branch
      %48 = sbr.rel (0) target = $region21
    $region20: #{tpu_custom_call.1} parent=1 // pred_region
      _
    $region21: #{tpu_custom_call.1} parent=1 // pred_fallthru
      _
    // Predicated region
    $region22: #{tpu_custom_call.1} parent=1 // pred_check
      _
    $region23: #{tpu_custom_call.1} parent=1 // pred_check_branch
      %50 = sbr.rel (0) target = $region25
    $region24: #{tpu_custom_call.1} parent=1 // pred_region
      %s52 = ssub.s32 3072, 3072
      %53 = vsyncadd [#allocation7], %s52
      %s54 = sshll.u32 [#allocation8], 4
      %s55 = int_to_ptr.vmem [resolvable:$true] %s54
      %60 = dma.hbm_to_vmem [thread:$0]  %s5, 3072, %s55, [#allocation7], 64, 64, 4
    $region25: #{tpu_custom_call.1} parent=1 // pred_fallthru
      _
    // Predicated region
    $region26: #{tpu_custom_call.1} parent=1 // pred_check
      _
    $region27: #{tpu_custom_call.1} parent=1 // pred_check_branch
      %62 = sbr.rel (0) target = $region29
    $region28: #{tpu_custom_call.1} parent=1 // pred_region
      _
    $region29: #{tpu_custom_call.1} parent=1 // pred_fallthru
      _
    // Predicated region
    $region30: #{tpu_custom_call.1} parent=1 // pred_check
      _
    $region31: #{tpu_custom_call.1} parent=1 // pred_check_branch
      %64 = sbr.rel (0) target = $region33
    $region32: #{tpu_custom_call.1} parent=1 // pred_region
      _
    $region33: #{tpu_custom_call.1} parent=1 // pred_fallthru
      _
    // Predicated region
    $region34: #{tpu_custom_call.1} parent=1 // pred_check
      _
    $region35: #{tpu_custom_call.1} parent=1 // pred_check_branch
      %66 = sbr.rel (0) target = $region37
    $region36: #{tpu_custom_call.1} parent=1 // pred_region
      %s68 = ssub.s32 2048, 2048
      %69 = vsyncadd [#allocation10], %s68
      %s70 = sshll.u32 [#allocation9], 4
      %s71 = int_to_ptr.vmem [resolvable:$true] %s70
      %76 = dma.hbm_to_vmem [thread:$0]  %s8, 2048, %s71, [#allocation10], 128, 128, 8
    $region37: #{tpu_custom_call.1} parent=1 // pred_fallthru
      _
    // Predicated region
    $region38: #{tpu_custom_call.1} parent=1 // pred_check
      _
    $region39: #{tpu_custom_call.1} parent=1 // pred_check_branch
      %78 = sbr.rel (0) target = $region41
    $region40: #{tpu_custom_call.1} parent=1 // pred_region
      %79 = dma.done [#allocation4], 512
    $region41: #{tpu_custom_call.1} parent=1 // pred_fallthru
      _
    // Predicated region
    $region42: #{tpu_custom_call.1} parent=1 // pred_check
      _
    $region43: #{tpu_custom_call.1} parent=1 // pred_check_branch
      %81 = sbr.rel (0) target = $region45
    $region44: #{tpu_custom_call.1} parent=1 // pred_region
      %82 = dma.done [#allocation7], 3072
    $region45: #{tpu_custom_call.1} parent=1 // pred_fallthru
      _
    // Predicated region
    $region46: #{tpu_custom_call.1} parent=1 // pred_check
      _
    $region47: #{tpu_custom_call.1} parent=1 // pred_check_branch
      %84 = sbr.rel (0) target = $region49
    $region48: #{tpu_custom_call.1} parent=1 // pred_region
      %85 = dma.done [#allocation7], 3072
    $region49: #{tpu_custom_call.1} parent=1 // pred_fallthru
      _
    // Predicated region
    $region50: #{tpu_custom_call.1} parent=1 // pred_check
      _
    $region51: #{tpu_custom_call.1} parent=1 // pred_check_branch
      %87 = sbr.rel (0) target = $region53
    $region52: #{tpu_custom_call.1} parent=1 // pred_region
      %88 = dma.done [#allocation10], 2048
    $region53: #{tpu_custom_call.1} parent=1 // pred_fallthru
      _
    %v90 = vld [vmem:[#allocation3] sm:$0xff]
    %v91 = vld [vmem:[#allocation3 + $0x8] sm:$0xff]
    %v92 = vld [vmem:[#allocation3 + $0x10] sm:$0xff]
    %v93 = vld [vmem:[#allocation3 + $0x18] sm:$0xff]
    %v94 = vlaneseq
    %v95 = vshrl.u32 %v94, 7
    %v96 = vadd.s32 %v95, 8
    %v97 = vadd.s32 %v95, 16
    %v98 = vadd.s32 %v95, 24
    %vm99 = vcmp.lt.s32.totalorder %v95, 0
    %v100 = vsub.s32 0, %v95
    %v101 = vsel %vm99, %v100, %v95
    %v102 = vshrl.u32 %v101, 4
    %v103 = vand.u32 %v101, 15
    %v104 = vsub.s32 0, %v103
    %v105 = vsel %vm99, %v104, %v103
    %vm106 = vcmp.lt.s32.totalorder %v96, 0
    %v107 = vsub.s32 0, %v96
    %v108 = vsel %vm106, %v107, %v96
    %v109 = vshrl.u32 %v108, 4
    %v110 = vand.u32 %v108, 15
    %v111 = vsub.s32 0, %v110
    %v112 = vsel %vm106, %v111, %v110
    %vm113 = vcmp.lt.s32.totalorder %v97, 0
    %v114 = vsub.s32 0, %v97
    %v115 = vsel %vm113, %v114, %v97
    %v116 = vshrl.u32 %v115, 4
    %v117 = vand.u32 %v115, 15
    %v118 = vsub.s32 0, %v117
    %v119 = vsel %vm113, %v118, %v117
    %vm120 = vcmp.lt.s32.totalorder %v98, 0
    %v121 = vsub.s32 0, %v98
    %v122 = vsel %vm120, %v121, %v98
    %v123 = vshrl.u32 %v122, 4
    %v124 = vand.u32 %v122, 15
    %v125 = vsub.s32 0, %v124
    %v126 = vsel %vm120, %v125, %v124
    %vm127 = vcmp.ne.s32.totalorder %v105, 0
    %vm128 = vcmp.ne.s32.totalorder %v112, 0
    %vm129 = vcmp.ne.s32.totalorder %v119, 0
    %vm130 = vcmp.ne.s32.totalorder %v126, 0
    %vm131 = vcmp.lt.s32.totalorder %v105, 0
    %vm132 = vcmp.lt.s32.totalorder %v112, 0
    %vm133 = vcmp.lt.s32.totalorder %v119, 0
    %vm134 = vcmp.lt.s32.totalorder %v126, 0
    %vm135 = vmand %vm131, %vm127
    %vm136 = vmand %vm132, %vm128
    %vm137 = vmand %vm133, %vm129
    %vm138 = vmand %vm134, %vm130
    %v139 = vadd.s32 %v105, 16
    %v140 = vadd.s32 %v112, 16
    %v141 = vadd.s32 %v119, 16
    %v142 = vadd.s32 %v126, 16
    %v143 = vsel %vm135, %v139, %v105
    %v144 = vsel %vm136, %v140, %v112
    %v145 = vsel %vm137, %v141, %v119
    %v146 = vsel %vm138, %v142, %v126
    %vm147 = vcmp.ne.s32.totalorder %v143, 0
    %vm148 = vcmp.ne.s32.totalorder %v144, 0
    %vm149 = vcmp.ne.s32.totalorder %v145, 0
    %vm150 = vcmp.ne.s32.totalorder %v146, 0
    %vm151 = vcmp.ne.s32.totalorder %v143, 15
    %vm152 = vcmp.ne.s32.totalorder %v144, 15
    %vm153 = vcmp.ne.s32.totalorder %v145, 15
    %vm154 = vcmp.ne.s32.totalorder %v146, 15
    %vm159 = vcmask 1040384
    %v160 = vrot.slane %v90, 7
    %v161 = vrot.slane %v91, 7
    %v162 = vsel %vm159, %v160, %v161
    %v163 = vrot.slane %v92, 7
    %v164 = vsel %vm159, %v161, %v163
    %v165 = vrot.slane %v93, 7
    %v166 = vsel %vm159, %v163, %v165
    %v171 = vsel %vm159, 0.0, %v160
    %v172 = vsel %vm147, %v171, 0.0
    %v173 = vsel %vm148, %v162, 0.0
    %v174 = vsel %vm149, %v164, 0.0
    %v175 = vsel %vm150, %v166, 0.0
    %vm176 = vcmask 1046528
    %v177 = vrot.slane %v90, 1
    %v178 = vrot.slane %v91, 1
    %v179 = vsel %vm176, %v177, %v178
    %v180 = vrot.slane %v92, 1
    %v181 = vsel %vm176, %v178, %v180
    %v182 = vrot.slane %v93, 1
    %v183 = vsel %vm176, %v180, %v182
    %v188 = vsel %vm176, %v182, 0.0
    %v189 = vsel %vm151, %v179, 0.0
    %v190 = vsel %vm152, %v181, 0.0
    %v191 = vsel %vm153, %v183, 0.0
    %v192 = vsel %vm154, %v188, 0.0
    %v193 = vpack.c.bf16 %v173, %v172
    %v194 = vpack.c.bf16 %v91, %v90
    %v195 = vpack.c.bf16 %v190, %v189
    %v196 = vpack.c.bf16 %v175, %v174
    %v197 = vpack.c.bf16 %v93, %v92
    %v198 = vpack.c.bf16 %v192, %v191
    %v199 = vld [vmem:[#allocation6] sm:$0xf]
    %v200 = vld [vmem:[#allocation6 + $0x4] sm:$0xf]
    %v201 = vld [vmem:[#allocation6 + $0x8] sm:$0xf]
    %v202 = vld [vmem:[#allocation6 + $0xc] sm:$0xf]
    %v203 = vld [vmem:[#allocation6 + $0x10] sm:$0xf]
    %v204 = vld [vmem:[#allocation6 + $0x14] sm:$0xf]
    %v205 = vld [vmem:[#allocation6 + $0x18] sm:$0xf]
    %v206 = vld [vmem:[#allocation6 + $0x1c] sm:$0xf]
    %v207 = vld [vmem:[#allocation6 + $0x20] sm:$0xf]
    %v208 = vld [vmem:[#allocation6 + $0x24] sm:$0xf]
    %v209 = vld [vmem:[#allocation6 + $0x28] sm:$0xf]
    %v210 = vld [vmem:[#allocation6 + $0x2c] sm:$0xf]
    %v211 = vld [vmem:[#allocation6 + $0x30] sm:$0xf]
    %v212 = vld [vmem:[#allocation6 + $0x34] sm:$0xf]
    %v213 = vld [vmem:[#allocation6 + $0x38] sm:$0xf]
    %v214 = vld [vmem:[#allocation6 + $0x3c] sm:$0xf]
    %v215 = vld [vmem:[#allocation6 + $0x40] sm:$0xf]
    %v216 = vld [vmem:[#allocation6 + $0x44] sm:$0xf]
    %v217 = vld [vmem:[#allocation6 + $0x48] sm:$0xf]
    %v218 = vld [vmem:[#allocation6 + $0x4c] sm:$0xf]
    %v219 = vld [vmem:[#allocation6 + $0x50] sm:$0xf]
    %v220 = vld [vmem:[#allocation6 + $0x54] sm:$0xf]
    %v221 = vld [vmem:[#allocation6 + $0x58] sm:$0xf]
    %v222 = vld [vmem:[#allocation6 + $0x5c] sm:$0xf]
    %v223 = vld [vmem:[#allocation6 + $0x60] sm:$0xf]
    %v224 = vld [vmem:[#allocation6 + $0x64] sm:$0xf]
    %v225 = vld [vmem:[#allocation6 + $0x68] sm:$0xf]
    %v226 = vld [vmem:[#allocation6 + $0x6c] sm:$0xf]
    %v227 = vld [vmem:[#allocation6 + $0x70] sm:$0xf]
    %v228 = vld [vmem:[#allocation6 + $0x74] sm:$0xf]
    %v229 = vld [vmem:[#allocation6 + $0x78] sm:$0xf]
    %v230 = vld [vmem:[#allocation6 + $0x7c] sm:$0xf]
    %v231 = vld [vmem:[#allocation6 + $0x80] sm:$0xf]
    %v232 = vld [vmem:[#allocation6 + $0x84] sm:$0xf]
    %v233 = vld [vmem:[#allocation6 + $0x88] sm:$0xf]
    %v234 = vld [vmem:[#allocation6 + $0x8c] sm:$0xf]
    %v235 = vld [vmem:[#allocation6 + $0x90] sm:$0xf]
    %v236 = vld [vmem:[#allocation6 + $0x94] sm:$0xf]
    %v237 = vld [vmem:[#allocation6 + $0x98] sm:$0xf]
    %v238 = vld [vmem:[#allocation6 + $0x9c] sm:$0xf]
    %v239 = vld [vmem:[#allocation6 + $0xa0] sm:$0xf]
    %v240 = vld [vmem:[#allocation6 + $0xa4] sm:$0xf]
    %v241 = vld [vmem:[#allocation6 + $0xa8] sm:$0xf]
    %v242 = vld [vmem:[#allocation6 + $0xac] sm:$0xf]
    %v243 = vld [vmem:[#allocation6 + $0xb0] sm:$0xf]
    %v244 = vld [vmem:[#allocation6 + $0xb4] sm:$0xf]
    %v245 = vld [vmem:[#allocation6 + $0xb8] sm:$0xf]
    %v246 = vld [vmem:[#allocation6 + $0xbc] sm:$0xf]
    %v295 = vunpack.c.l.b16 %v199
    %v296 = vunpack.c.l.b16 %v200
    %v297 = vunpack.c.l.b16 %v201
    %v298 = vunpack.c.l.b16 %v202
    %v299 = vunpack.c.l.b16 %v203
    %v300 = vunpack.c.l.b16 %v204
    %v301 = vunpack.c.l.b16 %v205
    %v302 = vunpack.c.l.b16 %v206
    %v303 = vunpack.c.l.b16 %v207
    %v304 = vunpack.c.l.b16 %v208
    %v305 = vunpack.c.l.b16 %v209
    %v306 = vunpack.c.l.b16 %v210
    %v307 = vunpack.c.l.b16 %v211
    %v308 = vunpack.c.l.b16 %v212
    %v309 = vunpack.c.l.b16 %v213
    %v310 = vunpack.c.l.b16 %v214
    %v311 = vunpack.c.l.b16 %v215
    %v312 = vunpack.c.l.b16 %v216
    %v313 = vunpack.c.l.b16 %v217
    %v314 = vunpack.c.l.b16 %v218
    %v315 = vunpack.c.l.b16 %v219
    %v316 = vunpack.c.l.b16 %v220
    %v317 = vunpack.c.l.b16 %v221
    %v318 = vunpack.c.l.b16 %v222
    %v319 = vunpack.c.l.b16 %v223
    %v320 = vunpack.c.l.b16 %v224
    %v321 = vunpack.c.l.b16 %v225
    %v322 = vunpack.c.l.b16 %v226
    %v323 = vunpack.c.l.b16 %v227
    %v324 = vunpack.c.l.b16 %v228
    %v325 = vunpack.c.l.b16 %v229
    %v326 = vunpack.c.l.b16 %v230
    %v327 = vunpack.c.l.b16 %v231
    %v328 = vunpack.c.l.b16 %v232
    %v329 = vunpack.c.l.b16 %v233
    %v330 = vunpack.c.l.b16 %v234
    %v331 = vunpack.c.l.b16 %v235
    %v332 = vunpack.c.l.b16 %v236
    %v333 = vunpack.c.l.b16 %v237
    %v334 = vunpack.c.l.b16 %v238
    %v335 = vunpack.c.l.b16 %v239
    %v336 = vunpack.c.l.b16 %v240
    %v337 = vunpack.c.l.b16 %v241
    %v338 = vunpack.c.l.b16 %v242
    %v339 = vunpack.c.l.b16 %v243
    %v340 = vunpack.c.l.b16 %v244
    %v341 = vunpack.c.l.b16 %v245
    %v342 = vunpack.c.l.b16 %v246
    %v343 = vpack.c.b16 %v296, %v295
    %v344 = vpack.c.b16 %v298, %v297
    %v345 = vpack.c.b16 %v300, %v299
    %v346 = vpack.c.b16 %v302, %v301
    %v347 = vpack.c.b16 %v304, %v303
    %v348 = vpack.c.b16 %v306, %v305
    %v349 = vpack.c.b16 %v308, %v307
    %v350 = vpack.c.b16 %v310, %v309
    %v351 = vpack.c.b16 %v312, %v311
    %v352 = vpack.c.b16 %v314, %v313
    %v353 = vpack.c.b16 %v316, %v315
    %v354 = vpack.c.b16 %v318, %v317
    %v355 = vpack.c.b16 %v320, %v319
    %v356 = vpack.c.b16 %v322, %v321
    %v357 = vpack.c.b16 %v324, %v323
    %v358 = vpack.c.b16 %v326, %v325
    %v359 = vpack.c.b16 %v328, %v327
    %v360 = vpack.c.b16 %v330, %v329
    %v361 = vpack.c.b16 %v332, %v331
    %v362 = vpack.c.b16 %v334, %v333
    %v363 = vpack.c.b16 %v336, %v335
    %v364 = vpack.c.b16 %v338, %v337
    %v365 = vpack.c.b16 %v340, %v339
    %v366 = vpack.c.b16 %v342, %v341
    %391 = vmatprep.subr.bf16.mxu0 0
    %392 = vmatpush1.bf16.msra.mxu0 %v343
    %393 = vmatprep.subr.bf16.mxu0 0
    %394 = vmatpush1.bf16.msra.mxu0 %v344
    %395 = vmatprep.subr.bf16.mxu0 0
    %396 = vmatpush1.bf16.msra.mxu0 %v345
    %397 = vmatprep.subr.bf16.mxu0 0
    %398 = vmatpush1.bf16.msra.mxu0 %v346
    %399 = vmatprep.subr.bf16.mxu0 0
    %400 = vmatpush1.bf16.msra.mxu0 %v347
    %401 = vmatprep.subr.bf16.mxu0 0
    %402 = vmatpush1.bf16.msra.mxu0 %v348
    %403 = vmatprep.subr.bf16.mxu0 0
    %404 = vmatpush1.bf16.msra.mxu0 %v349
    %405 = vmatprep.subr.bf16.mxu0 0
    %406 = vmatpush1.bf16.msra.mxu0 %v350
    %407 = vmatprep.subr.bf16.mxu0 0
    %408 = vmatpush1.bf16.msra.mxu0 %v351
    %409 = vmatprep.subr.bf16.mxu0 0
    %410 = vmatpush1.bf16.msra.mxu0 %v352
    %411 = vmatprep.subr.bf16.mxu0 0
    %412 = vmatpush1.bf16.msra.mxu0 %v353
    %413 = vmatprep.subr.bf16.mxu0 0
    %414 = vmatpush1.bf16.msra.mxu0 %v354
    %415 = vmatprep.subr.bf16.mxu0 0
    %416 = vmatpush1.bf16.msra.mxu0 %v355
    %417 = vmatprep.subr.bf16.mxu0 0
    %418 = vmatpush1.bf16.msra.mxu0 %v356
    %419 = vmatprep.subr.bf16.mxu0 0
    %420 = vmatpush1.bf16.msra.mxu0 %v357
    %421 = vmatprep.subr.bf16.mxu0 0
    %422 = vmatpush1.bf16.msra.mxu0 %v358
    %423 = vmatprep.mubr.bf16.mxu0 %v194
    %424 = vmatmul.mubr.bf16.gmra.mrb[0].mxu0 %v193
    %v425 = vpop.f32.mrb[0].mxu0
    %v426 = vadd.f32 0.0, %v425
    %v427 = vpop.f32.mrb[0].mxu0
    %v428 = vpop.f32.mrb[0].mxu0
    %v429 = vadd.f32 0.0, %v428
    %v430 = vpop.f32.mrb[0].mxu0
    %431 = vmatprep.mubr.bf16.mxu0 %v197
    %432 = vmatmul.mubr.bf16.gmra.mrb[0].mxu0 %v196
    %v433 = vpop.f32.mrb[0].mxu0
    %v434 = vadd.f32 0.0, %v433
    %v435 = vpop.f32.mrb[0].mxu0
    %v436 = vpop.f32.mrb[0].mxu0
    %v437 = vadd.f32 0.0, %v436
    %v438 = vpop.f32.mrb[0].mxu0
    %439 = vdwg.mxu0
    %440 = vmatprep.subr.bf16.mxu0 0
    %441 = vmatpush1.bf16.msra.mxu0 %v359
    %442 = vmatprep.subr.bf16.mxu0 0
    %443 = vmatpush1.bf16.msra.mxu0 %v360
    %444 = vmatprep.subr.bf16.mxu0 0
    %445 = vmatpush1.bf16.msra.mxu0 %v361
    %446 = vmatprep.subr.bf16.mxu0 0
    %447 = vmatpush1.bf16.msra.mxu0 %v362
    %448 = vmatprep.subr.bf16.mxu0 0
    %449 = vmatpush1.bf16.msra.mxu0 %v363
    %450 = vmatprep.subr.bf16.mxu0 0
    %451 = vmatpush1.bf16.msra.mxu0 %v364
    %452 = vmatprep.subr.bf16.mxu0 0
    %453 = vmatpush1.bf16.msra.mxu0 %v365
    %454 = vmatprep.subr.bf16.mxu0 0
    %455 = vmatpush1.bf16.msra.mxu0 %v366
    %456 = vmatprep.subr.bf16.mxu0 0
    %457 = vmatpush1.bf16.msra.mxu0 0
    %458 = vmatprep.subr.bf16.mxu0 0
    %459 = vmatpush1.bf16.msra.mxu0 0
    %460 = vmatprep.subr.bf16.mxu0 0
    %461 = vmatpush1.bf16.msra.mxu0 0
    %462 = vmatprep.subr.bf16.mxu0 0
    %463 = vmatpush1.bf16.msra.mxu0 0
    %464 = vmatprep.subr.bf16.mxu0 0
    %465 = vmatpush1.bf16.msra.mxu0 0
    %466 = vmatprep.subr.bf16.mxu0 0
    %467 = vmatpush1.bf16.msra.mxu0 0
    %468 = vmatprep.subr.bf16.mxu0 0
    %469 = vmatpush1.bf16.msra.mxu0 0
    %470 = vmatprep.subr.bf16.mxu0 0
    %471 = vmatpush1.bf16.msra.mxu0 0
    %472 = vmatprep.mubr.bf16.mxu0 0
    %473 = vmatmul.mubr.bf16.gmra.mrb[0].mxu0 %v195
    %v474 = vpop.f32.mrb[0].mxu0
    %v475 = vadd.f32 %v426, %v474
    %v476 = vpop.f32.mrb[0].mxu0
    %v477 = vpop.f32.mrb[0].mxu0
    %v478 = vadd.f32 %v429, %v477
    %v479 = vpop.f32.mrb[0].mxu0
    %480 = vmatprep.mubr.bf16.mxu0 0
    %481 = vmatmul.mubr.bf16.gmra.mrb[0].mxu0 %v198
    %v482 = vpop.f32.mrb[0].mxu0
    %v483 = vadd.f32 %v434, %v482
    %v484 = vpop.f32.mrb[0].mxu0
    %v485 = vpop.f32.mrb[0].mxu0
    %v486 = vadd.f32 %v437, %v485
    %v487 = vpop.f32.mrb[0].mxu0
    %488 = vdwg.mxu0
    %v489 = vld [vmem:[%s2] sm:$0x1]
    %v490 = vld [vmem:[%s3] sm:$0x1]
    %v491 = vld [vmem:[#allocation9] sm:$0xff]
    %v492 = vld [vmem:[#allocation9 + $0x8] sm:$0xff]
    %v493 = vld [vmem:[#allocation9 + $0x10] sm:$0xff]
    %v494 = vld [vmem:[#allocation9 + $0x18] sm:$0xff]
    %v495 = vld [vmem:[#allocation9 + $0x20] sm:$0xff]
    %v496 = vld [vmem:[#allocation9 + $0x28] sm:$0xff]
    %v497 = vld [vmem:[#allocation9 + $0x30] sm:$0xff]
    %v498 = vld [vmem:[#allocation9 + $0x38] sm:$0xff]
    %v499 = vld [vmem:[#allocation9 + $0x40] sm:$0xff]
    %v500 = vld [vmem:[#allocation9 + $0x48] sm:$0xff]
    %v501 = vld [vmem:[#allocation9 + $0x50] sm:$0xff]
    %v502 = vld [vmem:[#allocation9 + $0x58] sm:$0xff]
    %v503 = vld [vmem:[#allocation9 + $0x60] sm:$0xff]
    %v504 = vld [vmem:[#allocation9 + $0x68] sm:$0xff]
    %v505 = vld [vmem:[#allocation9 + $0x70] sm:$0xff]
    %v506 = vld [vmem:[#allocation9 + $0x78] sm:$0xff]
    %507 = vmatprep.subr.mxu0 0.0
    %508 = vmatpush1.msra.mxu0 %v491
    %509 = vmatprep.subr.mxu0 0.0
    %510 = vmatpush1.msra.mxu0 %v492
    %511 = vmatprep.subr.mxu0 0.0
    %512 = vmatpush1.msra.mxu0 %v493
    %513 = vmatprep.subr.mxu0 0.0
    %514 = vmatpush1.msra.mxu0 %v494
    %515 = vmatprep.subr.mxu0 0.0
    %516 = vmatpush1.msra.mxu0 %v495
    %517 = vmatprep.subr.mxu0 0.0
    %518 = vmatpush1.msra.mxu0 %v496
    %519 = vmatprep.subr.mxu0 0.0
    %520 = vmatpush1.msra.mxu0 %v497
    %521 = vmatprep.subr.mxu0 0.0
    %522 = vmatpush1.msra.mxu0 %v498
    %523 = vmatprep.subr.mxu0 0.0
    %524 = vmatpush1.msra.mxu0 %v499
    %525 = vmatprep.subr.mxu0 0.0
    %526 = vmatpush1.msra.mxu0 %v500
    %527 = vmatprep.subr.mxu0 0.0
    %528 = vmatpush1.msra.mxu0 %v501
    %529 = vmatprep.subr.mxu0 0.0
    %530 = vmatpush1.msra.mxu0 %v502
    %531 = vmatprep.subr.mxu0 0.0
    %532 = vmatpush1.msra.mxu0 %v503
    %533 = vmatprep.subr.mxu0 0.0
    %534 = vmatpush1.msra.mxu0 %v504
    %535 = vmatprep.subr.mxu0 0.0
    %536 = vmatpush1.msra.mxu0 %v505
    %537 = vmatprep.subr.mxu0 0.0
    %538 = vmatpush1.msra.mxu0 %v506
    %539 = vmatprep.subr.mxu0 0.0
    %540 = vmatpush1.msra.mxu0 0.0
    %541 = vmatprep.subr.mxu0 0.0
    %542 = vmatpush1.msra.mxu0 0.0
    %543 = vmatprep.subr.mxu0 0.0
    %544 = vmatpush1.msra.mxu0 0.0
    %545 = vmatprep.subr.mxu0 0.0
    %546 = vmatpush1.msra.mxu0 0.0
    %547 = vmatprep.subr.mxu0 0.0
    %548 = vmatpush1.msra.mxu0 0.0
    %549 = vmatprep.subr.mxu0 0.0
    %550 = vmatpush1.msra.mxu0 0.0
    %551 = vmatprep.subr.mxu0 0.0
    %552 = vmatpush1.msra.mxu0 0.0
    %553 = vmatprep.subr.mxu0 0.0
    %554 = vmatpush1.msra.mxu0 0.0
    %555 = vmatprep.subr.mxu0 0.0
    %556 = vmatpush1.msra.mxu0 0.0
    %557 = vmatprep.subr.mxu0 0.0
    %558 = vmatpush1.msra.mxu0 0.0
    %559 = vmatprep.subr.mxu0 0.0
    %560 = vmatpush1.msra.mxu0 0.0
    %561 = vmatprep.subr.mxu0 0.0
    %562 = vmatpush1.msra.mxu0 0.0
    %563 = vmatprep.subr.mxu0 0.0
    %564 = vmatpush1.msra.mxu0 0.0
    %565 = vmatprep.subr.mxu0 0.0
    %566 = vmatpush1.msra.mxu0 0.0
    %567 = vmatprep.subr.mxu0 0.0
    %568 = vmatpush1.msra.mxu0 0.0
    %569 = vmatprep.subr.mxu0 0.0
    %570 = vmatpush1.msra.mxu0 0.0
    %571 = vmatprep.mubr.f32.mxu0 0.0
    %572 = vmatmul.mubr.f32.gmra.mrb[0].mxu0 %v475
    %v573 = vpop.f32.mrb[0].mxu0
    %v574 = vadd.f32 0.0, %v573
    %v575 = vpop.f32.mrb[0].mxu0
    %576 = vmatprep.mubr.f32.mxu0 0.0
    %577 = vmatmul.mubr.f32.gmra.mrb[0].mxu0 %v478
    %v578 = vpop.f32.mrb[0].mxu0
    %v579 = vadd.f32 0.0, %v578
    %v580 = vpop.f32.mrb[0].mxu0
    %581 = vmatprep.mubr.f32.mxu0 0.0
    %582 = vmatmul.mubr.f32.gmra.mrb[0].mxu0 %v483
    %v583 = vpop.f32.mrb[0].mxu0
    %v584 = vadd.f32 0.0, %v583
    %v585 = vpop.f32.mrb[0].mxu0
    %586 = vmatprep.mubr.f32.mxu0 0.0
    %587 = vmatmul.mubr.f32.gmra.mrb[0].mxu0 %v486
    %v588 = vpop.f32.mrb[0].mxu0
    %v589 = vadd.f32 0.0, %v588
    %v590 = vpop.f32.mrb[0].mxu0
    %591 = vdwg.mxu0
    %v592 = vadd.f32 %v574, %v579
    %v593 = vadd.f32 %v592, %v584
    %v594 = vadd.f32 %v593, %v589
    %v595 = vrot.slane %v594, 4
    %v596 = vadd.f32 %v594, %v595
    %v597 = vrot.slane %v596, 2
    %v598 = vadd.f32 %v596, %v597
    %v599 = vrot.slane %v598, 1
    %v600 = vadd.f32 %v598, %v599
    %v601 = vmul.f32 %v475, %v475
    %v602 = vmul.f32 %v478, %v478
    %v603 = vmul.f32 %v483, %v483
    %v604 = vmul.f32 %v486, %v486
    %605 = vmatprep.subr.mxu0 0.0
    %606 = vmatpush1.msra.mxu0 %v491
    %607 = vmatprep.subr.mxu0 0.0
    %608 = vmatpush1.msra.mxu0 %v492
    %609 = vmatprep.subr.mxu0 0.0
    %610 = vmatpush1.msra.mxu0 %v493
    %611 = vmatprep.subr.mxu0 0.0
    %612 = vmatpush1.msra.mxu0 %v494
    %613 = vmatprep.subr.mxu0 0.0
    %614 = vmatpush1.msra.mxu0 %v495
    %615 = vmatprep.subr.mxu0 0.0
    %616 = vmatpush1.msra.mxu0 %v496
    %617 = vmatprep.subr.mxu0 0.0
    %618 = vmatpush1.msra.mxu0 %v497
    %619 = vmatprep.subr.mxu0 0.0
    %620 = vmatpush1.msra.mxu0 %v498
    %621 = vmatprep.subr.mxu0 0.0
    %622 = vmatpush1.msra.mxu0 %v499
    %623 = vmatprep.subr.mxu0 0.0
    %624 = vmatpush1.msra.mxu0 %v500
    %625 = vmatprep.subr.mxu0 0.0
    %626 = vmatpush1.msra.mxu0 %v501
    %627 = vmatprep.subr.mxu0 0.0
    %628 = vmatpush1.msra.mxu0 %v502
    %629 = vmatprep.subr.mxu0 0.0
    %630 = vmatpush1.msra.mxu0 %v503
    %631 = vmatprep.subr.mxu0 0.0
    %632 = vmatpush1.msra.mxu0 %v504
    %633 = vmatprep.subr.mxu0 0.0
    %634 = vmatpush1.msra.mxu0 %v505
    %635 = vmatprep.subr.mxu0 0.0
    %636 = vmatpush1.msra.mxu0 %v506
    %637 = vmatprep.subr.mxu0 0.0
    %638 = vmatpush1.msra.mxu0 0.0
    %639 = vmatprep.subr.mxu0 0.0
    %640 = vmatpush1.msra.mxu0 0.0
    %641 = vmatprep.subr.mxu0 0.0
    %642 = vmatpush1.msra.mxu0 0.0
    %643 = vmatprep.subr.mxu0 0.0
    %644 = vmatpush1.msra.mxu0 0.0
    %645 = vmatprep.subr.mxu0 0.0
    %646 = vmatpush1.msra.mxu0 0.0
    %647 = vmatprep.subr.mxu0 0.0
    %648 = vmatpush1.msra.mxu0 0.0
    %649 = vmatprep.subr.mxu0 0.0
    %650 = vmatpush1.msra.mxu0 0.0
    %651 = vmatprep.subr.mxu0 0.0
    %652 = vmatpush1.msra.mxu0 0.0
    %653 = vmatprep.subr.mxu0 0.0
    %654 = vmatpush1.msra.mxu0 0.0
    %655 = vmatprep.subr.mxu0 0.0
    %656 = vmatpush1.msra.mxu0 0.0
    %657 = vmatprep.subr.mxu0 0.0
    %658 = vmatpush1.msra.mxu0 0.0
    %659 = vmatprep.subr.mxu0 0.0
    %660 = vmatpush1.msra.mxu0 0.0
    %661 = vmatprep.subr.mxu0 0.0
    %662 = vmatpush1.msra.mxu0 0.0
    %663 = vmatprep.subr.mxu0 0.0
    %664 = vmatpush1.msra.mxu0 0.0
    %665 = vmatprep.subr.mxu0 0.0
    %666 = vmatpush1.msra.mxu0 0.0
    %667 = vmatprep.subr.mxu0 0.0
    %668 = vmatpush1.msra.mxu0 0.0
    %669 = vmatprep.mubr.f32.mxu0 0.0
    %670 = vmatmul.mubr.f32.gmra.mrb[0].mxu0 %v601
    %v671 = vpop.f32.mrb[0].mxu0
    %v672 = vadd.f32 0.0, %v671
    %v673 = vpop.f32.mrb[0].mxu0
    %674 = vmatprep.mubr.f32.mxu0 0.0
    %675 = vmatmul.mubr.f32.gmra.mrb[0].mxu0 %v602
    %v676 = vpop.f32.mrb[0].mxu0
    %v677 = vadd.f32 0.0, %v676
    %v678 = vpop.f32.mrb[0].mxu0
    %679 = vmatprep.mubr.f32.mxu0 0.0
    %680 = vmatmul.mubr.f32.gmra.mrb[0].mxu0 %v603
    %v681 = vpop.f32.mrb[0].mxu0
    %v682 = vadd.f32 0.0, %v681
    %v683 = vpop.f32.mrb[0].mxu0
    %684 = vmatprep.mubr.f32.mxu0 0.0
    %685 = vmatmul.mubr.f32.gmra.mrb[0].mxu0 %v604
    %v686 = vpop.f32.mrb[0].mxu0
    %v687 = vadd.f32 0.0, %v686
    %v688 = vpop.f32.mrb[0].mxu0
    %689 = vdwg.mxu0
    %v690 = vadd.f32 %v672, %v677
    %v691 = vadd.f32 %v690, %v682
    %v692 = vadd.f32 %v691, %v687
    %v693 = vrot.slane %v692, 4
    %v694 = vadd.f32 %v692, %v693
    %v695 = vrot.slane %v694, 2
    %v696 = vadd.f32 %v694, %v695
    %v697 = vrot.slane %v696, 1
    %v698 = vadd.f32 %v696, %v697
    %v699 = vmul.f32 %v600, 0.001953125
    %v700 = vmul.f32 %v698, 0.001953125
    %v701 = vmul.f32 %v699, %v699
    %v702 = vsub.f32 %v700, %v701
    %v703 = vadd.f32 %v702, 0.8
    %v704 = vrsqrt.pop %v703
    %v705 = vmul.f32 %v489, %v704
    %v706 = vmul.f32 %v699, %v705
    %v707 = vsub.f32 %v490, %v706
    %v709 = vlaneseq
    %v710 = vshrl.u32 %v709, 7
    %v711 = vsub.s32 0, %v710
    %v712 = vrot.slane %v705, %v711
    %v714 = vmul.f32 %v475, %v712
    %v715 = vmul.f32 %v478, %v712
    %v716 = vmul.f32 %v483, %v712
    %v717 = vmul.f32 %v486, %v712
    %v719 = vlaneseq
    %v720 = vshrl.u32 %v719, 7
    %v721 = vsub.s32 0, %v720
    %v722 = vrot.slane %v707, %v721
    %v724 = vadd.f32 %v714, %v722
    %v725 = vadd.f32 %v715, %v722
    %v726 = vadd.f32 %v716, %v722
    %v727 = vadd.f32 %v717, %v722
    %s728 = sld [smem:[#allocation2]]
    %vm729 = vcmp.gt.f32.partialorder %v724, 0.0
    %vm730 = vcmp.gt.f32.partialorder %v725, 0.0
    %vm731 = vcmp.gt.f32.partialorder %v726, 0.0
    %vm732 = vcmp.gt.f32.partialorder %v727, 0.0
    %v733 = vstv %s728
    %v734 = vmul.f32 %v733, %v724
    %v735 = vmul.f32 %v733, %v725
    %v736 = vmul.f32 %v733, %v726
    %v737 = vmul.f32 %v733, %v727
    %v738 = vsel %vm729, %v724, %v734
    %v739 = vsel %vm730, %v725, %v735
    %v740 = vsel %vm731, %v726, %v736
    %v741 = vsel %vm732, %v727, %v737
    %v746 = vrot.slane %v738, 7
    %v747 = vrot.slane %v739, 7
    %v748 = vsel %vm159, %v746, %v747
    %v749 = vrot.slane %v740, 7
    %v750 = vsel %vm159, %v747, %v749
    %v751 = vrot.slane %v741, 7
    %v752 = vsel %vm159, %v749, %v751
    %v757 = vsel %vm159, 0.0, %v746
    %v758 = vsel %vm147, %v757, 0.0
    %v759 = vsel %vm148, %v748, 0.0
    %v760 = vsel %vm149, %v750, 0.0
    %v761 = vsel %vm150, %v752, 0.0
    %v762 = vrot.slane %v738, 1
    %v763 = vrot.slane %v739, 1
    %v764 = vsel %vm176, %v762, %v763
    %v765 = vrot.slane %v740, 1
    %v766 = vsel %vm176, %v763, %v765
    %v767 = vrot.slane %v741, 1
    %v768 = vsel %vm176, %v765, %v767
    %v773 = vsel %vm176, %v767, 0.0
    %v774 = vsel %vm151, %v764, 0.0
    %v775 = vsel %vm152, %v766, 0.0
    %v776 = vsel %vm153, %v768, 0.0
    %v777 = vsel %vm154, %v773, 0.0
    %v778 = vpack.c.bf16 %v759, %v758
    %v779 = vpack.c.bf16 %v739, %v738
    %v780 = vpack.c.bf16 %v775, %v774
    %v781 = vpack.c.bf16 %v761, %v760
    %v782 = vpack.c.bf16 %v741, %v740
    %v783 = vpack.c.bf16 %v777, %v776
    %v784 = vld [vmem:[#allocation8] sm:$0xf]
    %v785 = vld [vmem:[#allocation8 + $0x4] sm:$0xf]
    %v786 = vld [vmem:[#allocation8 + $0x8] sm:$0xf]
    %v787 = vld [vmem:[#allocation8 + $0xc] sm:$0xf]
    %v788 = vld [vmem:[#allocation8 + $0x10] sm:$0xf]
    %v789 = vld [vmem:[#allocation8 + $0x14] sm:$0xf]
    %v790 = vld [vmem:[#allocation8 + $0x18] sm:$0xf]
    %v791 = vld [vmem:[#allocation8 + $0x1c] sm:$0xf]
    %v792 = vld [vmem:[#allocation8 + $0x20] sm:$0xf]
    %v793 = vld [vmem:[#allocation8 + $0x24] sm:$0xf]
    %v794 = vld [vmem:[#allocation8 + $0x28] sm:$0xf]
    %v795 = vld [vmem:[#allocation8 + $0x2c] sm:$0xf]
    %v796 = vld [vmem:[#allocation8 + $0x30] sm:$0xf]
    %v797 = vld [vmem:[#allocation8 + $0x34] sm:$0xf]
    %v798 = vld [vmem:[#allocation8 + $0x38] sm:$0xf]
    %v799 = vld [vmem:[#allocation8 + $0x3c] sm:$0xf]
    %v800 = vld [vmem:[#allocation8 + $0x40] sm:$0xf]
    %v801 = vld [vmem:[#allocation8 + $0x44] sm:$0xf]
    %v802 = vld [vmem:[#allocation8 + $0x48] sm:$0xf]
    %v803 = vld [vmem:[#allocation8 + $0x4c] sm:$0xf]
    %v804 = vld [vmem:[#allocation8 + $0x50] sm:$0xf]
    %v805 = vld [vmem:[#allocation8 + $0x54] sm:$0xf]
    %v806 = vld [vmem:[#allocation8 + $0x58] sm:$0xf]
    %v807 = vld [vmem:[#allocation8 + $0x5c] sm:$0xf]
    %v808 = vld [vmem:[#allocation8 + $0x60] sm:$0xf]
    %v809 = vld [vmem:[#allocation8 + $0x64] sm:$0xf]
    %v810 = vld [vmem:[#allocation8 + $0x68] sm:$0xf]
    %v811 = vld [vmem:[#allocation8 + $0x6c] sm:$0xf]
    %v812 = vld [vmem:[#allocation8 + $0x70] sm:$0xf]
    %v813 = vld [vmem:[#allocation8 + $0x74] sm:$0xf]
    %v814 = vld [vmem:[#allocation8 + $0x78] sm:$0xf]
    %v815 = vld [vmem:[#allocation8 + $0x7c] sm:$0xf]
    %v816 = vld [vmem:[#allocation8 + $0x80] sm:$0xf]
    %v817 = vld [vmem:[#allocation8 + $0x84] sm:$0xf]
    %v818 = vld [vmem:[#allocation8 + $0x88] sm:$0xf]
    %v819 = vld [vmem:[#allocation8 + $0x8c] sm:$0xf]
    %v820 = vld [vmem:[#allocation8 + $0x90] sm:$0xf]
    %v821 = vld [vmem:[#allocation8 + $0x94] sm:$0xf]
    %v822 = vld [vmem:[#allocation8 + $0x98] sm:$0xf]
    %v823 = vld [vmem:[#allocation8 + $0x9c] sm:$0xf]
    %v824 = vld [vmem:[#allocation8 + $0xa0] sm:$0xf]
    %v825 = vld [vmem:[#allocation8 + $0xa4] sm:$0xf]
    %v826 = vld [vmem:[#allocation8 + $0xa8] sm:$0xf]
    %v827 = vld [vmem:[#allocation8 + $0xac] sm:$0xf]
    %v828 = vld [vmem:[#allocation8 + $0xb0] sm:$0xf]
    %v829 = vld [vmem:[#allocation8 + $0xb4] sm:$0xf]
    %v830 = vld [vmem:[#allocation8 + $0xb8] sm:$0xf]
    %v831 = vld [vmem:[#allocation8 + $0xbc] sm:$0xf]
    %v880 = vunpack.c.l.b16 %v784
    %v881 = vunpack.c.l.b16 %v785
    %v882 = vunpack.c.l.b16 %v786
    %v883 = vunpack.c.l.b16 %v787
    %v884 = vunpack.c.l.b16 %v788
    %v885 = vunpack.c.l.b16 %v789
    %v886 = vunpack.c.l.b16 %v790
    %v887 = vunpack.c.l.b16 %v791
    %v888 = vunpack.c.l.b16 %v792
    %v889 = vunpack.c.l.b16 %v793
    %v890 = vunpack.c.l.b16 %v794
    %v891 = vunpack.c.l.b16 %v795
    %v892 = vunpack.c.l.b16 %v796
    %v893 = vunpack.c.l.b16 %v797
    %v894 = vunpack.c.l.b16 %v798
    %v895 = vunpack.c.l.b16 %v799
    %v896 = vunpack.c.l.b16 %v800
    %v897 = vunpack.c.l.b16 %v801
    %v898 = vunpack.c.l.b16 %v802
    %v899 = vunpack.c.l.b16 %v803
    %v900 = vunpack.c.l.b16 %v804
    %v901 = vunpack.c.l.b16 %v805
    %v902 = vunpack.c.l.b16 %v806
    %v903 = vunpack.c.l.b16 %v807
    %v904 = vunpack.c.l.b16 %v808
    %v905 = vunpack.c.l.b16 %v809
    %v906 = vunpack.c.l.b16 %v810
    %v907 = vunpack.c.l.b16 %v811
    %v908 = vunpack.c.l.b16 %v812
    %v909 = vunpack.c.l.b16 %v813
    %v910 = vunpack.c.l.b16 %v814
    %v911 = vunpack.c.l.b16 %v815
    %v912 = vunpack.c.l.b16 %v816
    %v913 = vunpack.c.l.b16 %v817
    %v914 = vunpack.c.l.b16 %v818
    %v915 = vunpack.c.l.b16 %v819
    %v916 = vunpack.c.l.b16 %v820
    %v917 = vunpack.c.l.b16 %v821
    %v918 = vunpack.c.l.b16 %v822
    %v919 = vunpack.c.l.b16 %v823
    %v920 = vunpack.c.l.b16 %v824
    %v921 = vunpack.c.l.b16 %v825
    %v922 = vunpack.c.l.b16 %v826
    %v923 = vunpack.c.l.b16 %v827
    %v924 = vunpack.c.l.b16 %v828
    %v925 = vunpack.c.l.b16 %v829
    %v926 = vunpack.c.l.b16 %v830
    %v927 = vunpack.c.l.b16 %v831
    %v928 = vpack.c.b16 %v881, %v880
    %v929 = vpack.c.b16 %v883, %v882
    %v930 = vpack.c.b16 %v885, %v884
    %v931 = vpack.c.b16 %v887, %v886
    %v932 = vpack.c.b16 %v889, %v888
    %v933 = vpack.c.b16 %v891, %v890
    %v934 = vpack.c.b16 %v893, %v892
    %v935 = vpack.c.b16 %v895, %v894
    %v936 = vpack.c.b16 %v897, %v896
    %v937 = vpack.c.b16 %v899, %v898
    %v938 = vpack.c.b16 %v901, %v900
    %v939 = vpack.c.b16 %v903, %v902
    %v940 = vpack.c.b16 %v905, %v904
    %v941 = vpack.c.b16 %v907, %v906
    %v942 = vpack.c.b16 %v909, %v908
    %v943 = vpack.c.b16 %v911, %v910
    %v944 = vpack.c.b16 %v913, %v912
    %v945 = vpack.c.b16 %v915, %v914
    %v946 = vpack.c.b16 %v917, %v916
    %v947 = vpack.c.b16 %v919, %v918
    %v948 = vpack.c.b16 %v921, %v920
    %v949 = vpack.c.b16 %v923, %v922
    %v950 = vpack.c.b16 %v925, %v924
    %v951 = vpack.c.b16 %v927, %v926
    %976 = vmatprep.subr.bf16.mxu0 0
    %977 = vmatpush1.bf16.msra.mxu0 %v928
    %978 = vmatprep.subr.bf16.mxu0 0
    %979 = vmatpush1.bf16.msra.mxu0 %v929
    %980 = vmatprep.subr.bf16.mxu0 0
    %981 = vmatpush1.bf16.msra.mxu0 %v930
    %982 = vmatprep.subr.bf16.mxu0 0
    %983 = vmatpush1.bf16.msra.mxu0 %v931
    %984 = vmatprep.subr.bf16.mxu0 0
    %985 = vmatpush1.bf16.msra.mxu0 %v932
    %986 = vmatprep.subr.bf16.mxu0 0
    %987 = vmatpush1.bf16.msra.mxu0 %v933
    %988 = vmatprep.subr.bf16.mxu0 0
    %989 = vmatpush1.bf16.msra.mxu0 %v934
    %990 = vmatprep.subr.bf16.mxu0 0
    %991 = vmatpush1.bf16.msra.mxu0 %v935
    %992 = vmatprep.subr.bf16.mxu0 0
    %993 = vmatpush1.bf16.msra.mxu0 %v936
    %994 = vmatprep.subr.bf16.mxu0 0
    %995 = vmatpush1.bf16.msra.mxu0 %v937
    %996 = vmatprep.subr.bf16.mxu0 0
    %997 = vmatpush1.bf16.msra.mxu0 %v938
    %998 = vmatprep.subr.bf16.mxu0 0
    %999 = vmatpush1.bf16.msra.mxu0 %v939
    %1000 = vmatprep.subr.bf16.mxu0 0
    %1001 = vmatpush1.bf16.msra.mxu0 %v940
    %1002 = vmatprep.subr.bf16.mxu0 0
    %1003 = vmatpush1.bf16.msra.mxu0 %v941
    %1004 = vmatprep.subr.bf16.mxu0 0
    %1005 = vmatpush1.bf16.msra.mxu0 %v942
    %1006 = vmatprep.subr.bf16.mxu0 0
    %1007 = vmatpush1.bf16.msra.mxu0 %v943
    %1008 = vmatprep.mubr.bf16.mxu0 %v779
    %1009 = vmatmul.mubr.bf16.gmra.mrb[0].mxu0 %v778
    %v1010 = vpop.f32.mrb[0].mxu0
    %v1011 = vadd.f32 0.0, %v1010
    %v1012 = vpop.f32.mrb[0].mxu0
    %v1013 = vpop.f32.mrb[0].mxu0
    %v1014 = vadd.f32 0.0, %v1013
    %v1015 = vpop.f32.mrb[0].mxu0
    %1016 = vmatprep.mubr.bf16.mxu0 %v782
    %1017 = vmatmul.mubr.bf16.gmra.mrb[0].mxu0 %v781
    %v1018 = vpop.f32.mrb[0].mxu0
    %v1019 = vadd.f32 0.0, %v1018
    %v1020 = vpop.f32.mrb[0].mxu0
    %v1021 = vpop.f32.mrb[0].mxu0
    %v1022 = vadd.f32 0.0, %v1021
    %v1023 = vpop.f32.mrb[0].mxu0
    %1024 = vdwg.mxu0
    %1025 = vmatprep.subr.bf16.mxu0 0
    %1026 = vmatpush1.bf16.msra.mxu0 %v944
    %1027 = vmatprep.subr.bf16.mxu0 0
    %1028 = vmatpush1.bf16.msra.mxu0 %v945
    %1029 = vmatprep.subr.bf16.mxu0 0
    %1030 = vmatpush1.bf16.msra.mxu0 %v946
    %1031 = vmatprep.subr.bf16.mxu0 0
    %1032 = vmatpush1.bf16.msra.mxu0 %v947
    %1033 = vmatprep.subr.bf16.mxu0 0
    %1034 = vmatpush1.bf16.msra.mxu0 %v948
    %1035 = vmatprep.subr.bf16.mxu0 0
    %1036 = vmatpush1.bf16.msra.mxu0 %v949
    %1037 = vmatprep.subr.bf16.mxu0 0
    %1038 = vmatpush1.bf16.msra.mxu0 %v950
    %1039 = vmatprep.subr.bf16.mxu0 0
    %1040 = vmatpush1.bf16.msra.mxu0 %v951
    %1041 = vmatprep.subr.bf16.mxu0 0
    %1042 = vmatpush1.bf16.msra.mxu0 0
    %1043 = vmatprep.subr.bf16.mxu0 0
    %1044 = vmatpush1.bf16.msra.mxu0 0
    %1045 = vmatprep.subr.bf16.mxu0 0
    %1046 = vmatpush1.bf16.msra.mxu0 0
    %1047 = vmatprep.subr.bf16.mxu0 0
    %1048 = vmatpush1.bf16.msra.mxu0 0
    %1049 = vmatprep.subr.bf16.mxu0 0
    %1050 = vmatpush1.bf16.msra.mxu0 0
    %1051 = vmatprep.subr.bf16.mxu0 0
    %1052 = vmatpush1.bf16.msra.mxu0 0
    %1053 = vmatprep.subr.bf16.mxu0 0
    %1054 = vmatpush1.bf16.msra.mxu0 0
    %1055 = vmatprep.subr.bf16.mxu0 0
    %1056 = vmatpush1.bf16.msra.mxu0 0
    %1057 = vmatprep.mubr.bf16.mxu0 0
    %1058 = vmatmul.mubr.bf16.gmra.mrb[0].mxu0 %v780
    %v1059 = vpop.f32.mrb[0].mxu0
    %v1060 = vadd.f32 %v1011, %v1059
    %v1061 = vpop.f32.mrb[0].mxu0
    %v1062 = vpop.f32.mrb[0].mxu0
    %v1063 = vadd.f32 %v1014, %v1062
    %v1064 = vpop.f32.mrb[0].mxu0
    %1065 = vmatprep.mubr.bf16.mxu0 0
    %1066 = vmatmul.mubr.bf16.gmra.mrb[0].mxu0 %v783
    %v1067 = vpop.f32.mrb[0].mxu0
    %v1068 = vadd.f32 %v1019, %v1067
    %v1069 = vpop.f32.mrb[0].mxu0
    %v1070 = vpop.f32.mrb[0].mxu0
    %v1071 = vadd.f32 %v1022, %v1070
    %v1072 = vpop.f32.mrb[0].mxu0
    %1073 = vdwg.mxu0
    %v1074 = vld [vmem:[%s6] sm:$0x1]
    %v1075 = vld [vmem:[%s7] sm:$0x1]
    %1076 = vmatprep.subr.mxu0 0.0
    %1077 = vmatpush1.msra.mxu0 %v491
    %1078 = vmatprep.subr.mxu0 0.0
    %1079 = vmatpush1.msra.mxu0 %v492
    %1080 = vmatprep.subr.mxu0 0.0
    %1081 = vmatpush1.msra.mxu0 %v493
    %1082 = vmatprep.subr.mxu0 0.0
    %1083 = vmatpush1.msra.mxu0 %v494
    %1084 = vmatprep.subr.mxu0 0.0
    %1085 = vmatpush1.msra.mxu0 %v495
    %1086 = vmatprep.subr.mxu0 0.0
    %1087 = vmatpush1.msra.mxu0 %v496
    %1088 = vmatprep.subr.mxu0 0.0
    %1089 = vmatpush1.msra.mxu0 %v497
    %1090 = vmatprep.subr.mxu0 0.0
    %1091 = vmatpush1.msra.mxu0 %v498
    %1092 = vmatprep.subr.mxu0 0.0
    %1093 = vmatpush1.msra.mxu0 %v499
    %1094 = vmatprep.subr.mxu0 0.0
    %1095 = vmatpush1.msra.mxu0 %v500
    %1096 = vmatprep.subr.mxu0 0.0
    %1097 = vmatpush1.msra.mxu0 %v501
    %1098 = vmatprep.subr.mxu0 0.0
    %1099 = vmatpush1.msra.mxu0 %v502
    %1100 = vmatprep.subr.mxu0 0.0
    %1101 = vmatpush1.msra.mxu0 %v503
    %1102 = vmatprep.subr.mxu0 0.0
    %1103 = vmatpush1.msra.mxu0 %v504
    %1104 = vmatprep.subr.mxu0 0.0
    %1105 = vmatpush1.msra.mxu0 %v505
    %1106 = vmatprep.subr.mxu0 0.0
    %1107 = vmatpush1.msra.mxu0 %v506
    %1108 = vmatprep.subr.mxu0 0.0
    %1109 = vmatpush1.msra.mxu0 0.0
    %1110 = vmatprep.subr.mxu0 0.0
    %1111 = vmatpush1.msra.mxu0 0.0
    %1112 = vmatprep.subr.mxu0 0.0
    %1113 = vmatpush1.msra.mxu0 0.0
    %1114 = vmatprep.subr.mxu0 0.0
    %1115 = vmatpush1.msra.mxu0 0.0
    %1116 = vmatprep.subr.mxu0 0.0
    %1117 = vmatpush1.msra.mxu0 0.0
    %1118 = vmatprep.subr.mxu0 0.0
    %1119 = vmatpush1.msra.mxu0 0.0
    %1120 = vmatprep.subr.mxu0 0.0
    %1121 = vmatpush1.msra.mxu0 0.0
    %1122 = vmatprep.subr.mxu0 0.0
    %1123 = vmatpush1.msra.mxu0 0.0
    %1124 = vmatprep.subr.mxu0 0.0
    %1125 = vmatpush1.msra.mxu0 0.0
    %1126 = vmatprep.subr.mxu0 0.0
    %1127 = vmatpush1.msra.mxu0 0.0
    %1128 = vmatprep.subr.mxu0 0.0
    %1129 = vmatpush1.msra.mxu0 0.0
    %1130 = vmatprep.subr.mxu0 0.0
    %1131 = vmatpush1.msra.mxu0 0.0
    %1132 = vmatprep.subr.mxu0 0.0
    %1133 = vmatpush1.msra.mxu0 0.0
    %1134 = vmatprep.subr.mxu0 0.0
    %1135 = vmatpush1.msra.mxu0 0.0
    %1136 = vmatprep.subr.mxu0 0.0
    %1137 = vmatpush1.msra.mxu0 0.0
    %1138 = vmatprep.subr.mxu0 0.0
    %1139 = vmatpush1.msra.mxu0 0.0
    %1140 = vmatprep.mubr.f32.mxu0 0.0
    %1141 = vmatmul.mubr.f32.gmra.mrb[0].mxu0 %v1060
    %v1142 = vpop.f32.mrb[0].mxu0
    %v1143 = vadd.f32 0.0, %v1142
    %v1144 = vpop.f32.mrb[0].mxu0
    %1145 = vmatprep.mubr.f32.mxu0 0.0
    %1146 = vmatmul.mubr.f32.gmra.mrb[0].mxu0 %v1063
    %v1147 = vpop.f32.mrb[0].mxu0
    %v1148 = vadd.f32 0.0, %v1147
    %v1149 = vpop.f32.mrb[0].mxu0
    %1150 = vmatprep.mubr.f32.mxu0 0.0
    %1151 = vmatmul.mubr.f32.gmra.mrb[0].mxu0 %v1068
    %v1152 = vpop.f32.mrb[0].mxu0
    %v1153 = vadd.f32 0.0, %v1152
    %v1154 = vpop.f32.mrb[0].mxu0
    %1155 = vmatprep.mubr.f32.mxu0 0.0
    %1156 = vmatmul.mubr.f32.gmra.mrb[0].mxu0 %v1071
    %v1157 = vpop.f32.mrb[0].mxu0
    %v1158 = vadd.f32 0.0, %v1157
    %v1159 = vpop.f32.mrb[0].mxu0
    %1160 = vdwg.mxu0
    %v1161 = vadd.f32 %v1143, %v1148
    %v1162 = vadd.f32 %v1161, %v1153
    %v1163 = vadd.f32 %v1162, %v1158
    %v1164 = vrot.slane %v1163, 4
    %v1165 = vadd.f32 %v1163, %v1164
    %v1166 = vrot.slane %v1165, 2
    %v1167 = vadd.f32 %v1165, %v1166
    %v1168 = vrot.slane %v1167, 1
    %v1169 = vadd.f32 %v1167, %v1168
    %v1170 = vmul.f32 %v1060, %v1060
    %v1171 = vmul.f32 %v1063, %v1063
    %v1172 = vmul.f32 %v1068, %v1068
    %v1173 = vmul.f32 %v1071, %v1071
    %1174 = vmatprep.subr.mxu0 0.0
    %1175 = vmatpush1.msra.mxu0 %v491
    %1176 = vmatprep.subr.mxu0 0.0
    %1177 = vmatpush1.msra.mxu0 %v492
    %1178 = vmatprep.subr.mxu0 0.0
    %1179 = vmatpush1.msra.mxu0 %v493
    %1180 = vmatprep.subr.mxu0 0.0
    %1181 = vmatpush1.msra.mxu0 %v494
    %1182 = vmatprep.subr.mxu0 0.0
    %1183 = vmatpush1.msra.mxu0 %v495
    %1184 = vmatprep.subr.mxu0 0.0
    %1185 = vmatpush1.msra.mxu0 %v496
    %1186 = vmatprep.subr.mxu0 0.0
    %1187 = vmatpush1.msra.mxu0 %v497
    %1188 = vmatprep.subr.mxu0 0.0
    %1189 = vmatpush1.msra.mxu0 %v498
    %1190 = vmatprep.subr.mxu0 0.0
    %1191 = vmatpush1.msra.mxu0 %v499
    %1192 = vmatprep.subr.mxu0 0.0
    %1193 = vmatpush1.msra.mxu0 %v500
    %1194 = vmatprep.subr.mxu0 0.0
    %1195 = vmatpush1.msra.mxu0 %v501
    %1196 = vmatprep.subr.mxu0 0.0
    %1197 = vmatpush1.msra.mxu0 %v502
    %1198 = vmatprep.subr.mxu0 0.0
    %1199 = vmatpush1.msra.mxu0 %v503
    %1200 = vmatprep.subr.mxu0 0.0
    %1201 = vmatpush1.msra.mxu0 %v504
    %1202 = vmatprep.subr.mxu0 0.0
    %1203 = vmatpush1.msra.mxu0 %v505
    %1204 = vmatprep.subr.mxu0 0.0
    %1205 = vmatpush1.msra.mxu0 %v506
    %1206 = vmatprep.subr.mxu0 0.0
    %1207 = vmatpush1.msra.mxu0 0.0
    %1208 = vmatprep.subr.mxu0 0.0
    %1209 = vmatpush1.msra.mxu0 0.0
    %1210 = vmatprep.subr.mxu0 0.0
    %1211 = vmatpush1.msra.mxu0 0.0
    %1212 = vmatprep.subr.mxu0 0.0
    %1213 = vmatpush1.msra.mxu0 0.0
    %1214 = vmatprep.subr.mxu0 0.0
    %1215 = vmatpush1.msra.mxu0 0.0
    %1216 = vmatprep.subr.mxu0 0.0
    %1217 = vmatpush1.msra.mxu0 0.0
    %1218 = vmatprep.subr.mxu0 0.0
    %1219 = vmatpush1.msra.mxu0 0.0
    %1220 = vmatprep.subr.mxu0 0.0
    %1221 = vmatpush1.msra.mxu0 0.0
    %1222 = vmatprep.subr.mxu0 0.0
    %1223 = vmatpush1.msra.mxu0 0.0
    %1224 = vmatprep.subr.mxu0 0.0
    %1225 = vmatpush1.msra.mxu0 0.0
    %1226 = vmatprep.subr.mxu0 0.0
    %1227 = vmatpush1.msra.mxu0 0.0
    %1228 = vmatprep.subr.mxu0 0.0
    %1229 = vmatpush1.msra.mxu0 0.0
    %1230 = vmatprep.subr.mxu0 0.0
    %1231 = vmatpush1.msra.mxu0 0.0
    %1232 = vmatprep.subr.mxu0 0.0
    %1233 = vmatpush1.msra.mxu0 0.0
    %1234 = vmatprep.subr.mxu0 0.0
    %1235 = vmatpush1.msra.mxu0 0.0
    %1236 = vmatprep.subr.mxu0 0.0
    %1237 = vmatpush1.msra.mxu0 0.0
    %1238 = vmatprep.mubr.f32.mxu0 0.0
    %1239 = vmatmul.mubr.f32.gmra.mrb[0].mxu0 %v1170
    %v1240 = vpop.f32.mrb[0].mxu0
    %v1241 = vadd.f32 0.0, %v1240
    %v1242 = vpop.f32.mrb[0].mxu0
    %1243 = vmatprep.mubr.f32.mxu0 0.0
    %1244 = vmatmul.mubr.f32.gmra.mrb[0].mxu0 %v1171
    %v1245 = vpop.f32.mrb[0].mxu0
    %v1246 = vadd.f32 0.0, %v1245
    %v1247 = vpop.f32.mrb[0].mxu0
    %1248 = vmatprep.mubr.f32.mxu0 0.0
    %1249 = vmatmul.mubr.f32.gmra.mrb[0].mxu0 %v1172
    %v1250 = vpop.f32.mrb[0].mxu0
    %v1251 = vadd.f32 0.0, %v1250
    %v1252 = vpop.f32.mrb[0].mxu0
    %1253 = vmatprep.mubr.f32.mxu0 0.0
    %1254 = vmatmul.mubr.f32.gmra.mrb[0].mxu0 %v1173
    %v1255 = vpop.f32.mrb[0].mxu0
    %v1256 = vadd.f32 0.0, %v1255
    %v1257 = vpop.f32.mrb[0].mxu0
    %1258 = vdwg.mxu0
    %v1259 = vadd.f32 %v1241, %v1246
    %v1260 = vadd.f32 %v1259, %v1251
    %v1261 = vadd.f32 %v1260, %v1256
    %v1262 = vrot.slane %v1261, 4
    %v1263 = vadd.f32 %v1261, %v1262
    %v1264 = vrot.slane %v1263, 2
    %v1265 = vadd.f32 %v1263, %v1264
    %v1266 = vrot.slane %v1265, 1
    %v1267 = vadd.f32 %v1265, %v1266
    %v1268 = vmul.f32 %v1169, 0.001953125
    %v1269 = vmul.f32 %v1267, 0.001953125
    %v1270 = vmul.f32 %v1268, %v1268
    %v1271 = vsub.f32 %v1269, %v1270
    %v1272 = vadd.f32 %v1271, 0.8
    %v1273 = vrsqrt.pop %v1272
    %v1274 = vmul.f32 %v1074, %v1273
    %v1275 = vmul.f32 %v1268, %v1274
    %v1276 = vsub.f32 %v1075, %v1275
    %v1278 = vlaneseq
    %v1279 = vshrl.u32 %v1278, 7
    %v1280 = vsub.s32 0, %v1279
    %v1281 = vrot.slane %v1274, %v1280
    %v1283 = vmul.f32 %v1060, %v1281
    %v1284 = vmul.f32 %v1063, %v1281
    %v1285 = vmul.f32 %v1068, %v1281
    %v1286 = vmul.f32 %v1071, %v1281
    %v1287 = vadd.f32 %v90, %v1283
    %v1288 = vadd.f32 %v91, %v1284
    %v1289 = vadd.f32 %v92, %v1285
    %v1290 = vadd.f32 %v93, %v1286
    %v1292 = vlaneseq
    %v1293 = vshrl.u32 %v1292, 7
    %v1294 = vsub.s32 0, %v1293
    %v1295 = vrot.slane %v1276, %v1294
    %v1297 = vadd.f32 %v1287, %v1295
    %v1298 = vadd.f32 %v1288, %v1295
    %v1299 = vadd.f32 %v1289, %v1295
    %v1300 = vadd.f32 %v1290, %v1295
    %1301 = vst [vmem:[#allocation11] sm:$0xff] %v1297
    %1302 = vst [vmem:[#allocation11 + $0x8] sm:$0xff] %v1298
    %1303 = vst [vmem:[#allocation11 + $0x10] sm:$0xff] %v1299
    %1304 = vst [vmem:[#allocation11 + $0x18] sm:$0xff] %v1300
    // Predicated region
    $region54: #{tpu_custom_call.1} parent=1 // pred_check
      _
    $region55: #{tpu_custom_call.1} parent=1 // pred_check_branch
      %1306 = sbr.rel (0) target = $region57
    $region56: #{tpu_custom_call.1} parent=1 // pred_region
      %s1308 = ssub.s32 512, 512
      %1309 = vsyncadd [#allocation5], %s1308
      %s1310 = sshll.u32 [#allocation11], 4
      %s1311 = int_to_ptr.vmem [resolvable:$true] %s1310
      %1316 = dma.vmem_to_hbm [thread:$0]  %s1311, 512, %s9, [#allocation5], 128, 128, 8
    $region57: #{tpu_custom_call.1} parent=1 // pred_fallthru
      _
    // Predicated region
    $region58: #{tpu_custom_call.1} parent=1 // pred_check
      _
    $region59: #{tpu_custom_call.1} parent=1 // pred_check_branch
      %1318 = sbr.rel (0) target = $region61
    $region60: #{tpu_custom_call.1} parent=1 // pred_region
      %1319 = dma.done [#allocation5], 512
    $region61: #{tpu_custom_call.1} parent=1 // pred_fallthru
      _
    %1320 = vsyncpa [#allocation4], 1
    %1321 = vsyncpa [#allocation7], 1
    %1322 = vsyncpa [#allocation10], 1
    %1323 = vsyncpa [#allocation5], 1

</llo_original>
